<compile_context>
chip_gen: v7x
topology: tpu7x:2x2x1
jax: 0.10.0
libtpu: 0.0.40
codegen_flags: <defaults>
</compile_context>

<pallas_src>
import functools

import jax
import jax.numpy as jnp
from jax.experimental import pallas as pl
from jax.experimental.pallas import tpu as pltpu


def _round_up(n, m):
    return ((n + m - 1) // m) * m


def _edge_mlp(m, w1_ref, b1_ref, w2_ref, b2_ref, w3_ref, b3_ref, out_dtype):
    """h = LReLU(LReLU(LReLU(m@W1+b1)@W2+b2)@W3+b3); matmuls in compute dtype, f32 acc."""
    cdt = w1_ref.dtype  # matmul input dtype (bf16 by default, f32 optional)

    def lrelu(h):  # PyTorch nn.LeakyReLU default negative_slope = 0.01
        return jnp.where(h > 0, h, 0.01 * h)

    h = jnp.dot(m.astype(cdt), w1_ref[...], preferred_element_type=jnp.float32)
    h = lrelu(h + b1_ref[...])
    h = jnp.dot(h.astype(cdt), w2_ref[...], preferred_element_type=jnp.float32)
    h = lrelu(h + b2_ref[...])
    h = jnp.dot(h.astype(cdt), w3_ref[...], preferred_element_type=jnp.float32)
    h = lrelu(h + b3_ref[...])
    return h.astype(out_dtype)


def _fused_kernel(src_ref, dst_ref, x_ref,
                  w1_ref, b1_ref, w2_ref, b2_ref, w3_ref, b3_ref, o_ref):
    """u_add_v message build (one-hot MXU matmul over the resident node table) + edge MLP."""
    et = src_ref.shape[0]
    n = x_ref.shape[0]
    cdt = x_ref.dtype
    node_ids = jax.lax.broadcasted_iota(jnp.int32, (et, n), 1)
    # onehot[e, v] = (v == src[e]) + (v == dst[e]); a self-edge correctly yields 2*x[v].
    onehot = (jnp.where(node_ids == src_ref[...], 1.0, 0.0)
              + jnp.where(node_ids == dst_ref[...], 1.0, 0.0)).astype(cdt)
    m = jnp.dot(onehot, x_ref[...], preferred_element_type=jnp.float32)
    o_ref[...] = _edge_mlp(m, w1_ref, b1_ref, w2_ref, b2_ref, w3_ref, b3_ref, o_ref.dtype)


def _mlp_kernel(m_ref, w1_ref, b1_ref, w2_ref, b2_ref, w3_ref, b3_ref, o_ref):
    """Fallback path: the message buffer m was built by XLA; run only the edge MLP here."""
    o_ref[...] = _edge_mlp(m_ref[...], w1_ref, b1_ref, w2_ref, b2_ref, w3_ref, b3_ref,
                           o_ref.dtype)


@functools.partial(
    jax.jit,
    static_argnames=("edge_tile", "compute_dtype", "out_dtype", "fuse_gather",
                     "max_fused_nodes"))
def dti_conv_graph3_v2(atom_feats, src, dst, params, *,
                       edge_tile=4096,
                       compute_dtype=jnp.bfloat16,
                       out_dtype=None,
                       fuse_gather=None,
                       max_fused_nodes=256):
    """Pallas implementation of DTIConvGraph3_V2.forward.

    atom_feats: [N, in_dim] node features
    src, dst:   [E] int32 edge endpoints (DGL graph as explicit index arrays)
    params:     dict with w1 [in_dim,out_dim], b1 [out_dim], w2, b2, w3, b3
    returns:    [E, out_dim] edge features e_m

    edge_tile:       edges per grid step (multiple of 16); clamped for small graphs.
    compute_dtype:   matmul input dtype (bf16 default; f32 for bit-exact checks).
    out_dtype:       output dtype (None -> atom_feats.dtype).
    fuse_gather:     None -> auto (fuse when N <= max_fused_nodes); True/False to force.
    """
    assert edge_tile % 16 == 0, "edge_tile must be a multiple of 16"

    w1, b1 = params["w1"], params["b1"]
    w2, b2 = params["w2"], params["b2"]
    w3, b3 = params["w3"], params["b3"]
    in_dim, out_dim = w1.shape
    N = atom_feats.shape[0]
    E = src.shape[0]
    if out_dtype is None:
        out_dtype = atom_feats.dtype
    csz = jnp.dtype(compute_dtype).itemsize
    osz = jnp.dtype(out_dtype).itemsize

    # Edge tile: large enough to amortize per-grid-step overhead, clamped so small graphs
    # don't pay for a mostly-padded tile and so the grid keeps >=2 steps when possible
    # (both v7x TensorCores get work via the "parallel" grid axis).
    tile = min(edge_tile, max(256, _round_up(pl.cdiv(E, 2), 256)))
    E_pad = _round_up(E, tile)
    grid = (E_pad // tile,)

    # Pad the cheap int32 index vectors (padded edges read node 0; rows sliced off below).
    src_p = jnp.pad(src.astype(jnp.int32), (0, E_pad - E))
    dst_p = jnp.pad(dst.astype(jnp.int32), (0, E_pad - E))

    # Cast inputs/weights to compute dtype; biases stay f32 (added after f32 accumulation).
    x_c = atom_feats.astype(compute_dtype)
    w1c = w1.astype(compute_dtype)
    w2c = w2.astype(compute_dtype)
    w3c = w3.astype(compute_dtype)
    b1f = b1.reshape(1, -1).astype(jnp.float32)
    b2f = b2.reshape(1, -1).astype(jnp.float32)
    b3f = b3.reshape(1, -1).astype(jnp.float32)

    # Grid-invariant weight/bias blocks (full arrays); Pallas fetches them once.
    # TODO(synk): pipeline_mode=pl.Buffered(1) on these would drop their second buffer
    # (sub-MB VMEM saving); skipped to keep the spec maximally portable.
    w1_spec = pl.BlockSpec((in_dim, out_dim), lambda i: (0, 0))
    w_spec = pl.BlockSpec((out_dim, out_dim), lambda i: (0, 0))
    b_spec = pl.BlockSpec((1, out_dim), lambda i: (0, 0))
    out_spec = pl.BlockSpec((tile, out_dim), lambda i: (i, 0))

    mlp_flops = 2 * E_pad * (in_dim * out_dim + 2 * out_dim * out_dim)
    w_bytes = (in_dim * out_dim + 2 * out_dim * out_dim) * csz + 3 * out_dim * 4
    out_bytes = E_pad * out_dim * osz
    compiler_params = pltpu.CompilerParams(
        dimension_semantics=("parallel",),
        vmem_limit_bytes=32 * 1024 * 1024,
    )

    if fuse_gather is None:
        fuse_gather = N <= max_fused_nodes

    if fuse_gather:
        # Whole node table resident in VMEM; only indices + output stream over HBM.
        idx_spec = pl.BlockSpec((tile, 1), lambda i: (i, 0))
        x_spec = pl.BlockSpec((N, in_dim), lambda i: (0, 0))
        cost = pl.CostEstimate(
            flops=mlp_flops + 2 * E_pad * N * in_dim,
            transcendentals=0,
            bytes_accessed=2 * E_pad * 4 + N * in_dim * csz + w_bytes + out_bytes,
        )
        out = pl.pallas_call(
            _fused_kernel,
            out_shape=jax.ShapeDtypeStruct((E_pad, out_dim), out_dtype),
            grid_spec=pltpu.PrefetchScalarGridSpec(
                num_scalar_prefetch=0,
                grid=grid,
                in_specs=[idx_spec, idx_spec, x_spec,
                          w1_spec, b_spec, w_spec, b_spec, w_spec, b_spec],
                out_specs=out_spec,
            ),
            compiler_params=compiler_params,
            cost_estimate=cost,
        )(src_p.reshape(E_pad, 1), dst_p.reshape(E_pad, 1), x_c,
          w1c, b1f, w2c, b2f, w3c, b3f)
    else:
        # Large node table: u_add_v gather stays in XLA, in compute_dtype and without
        # any feature padding to keep the streamed m buffer as small as possible.
        m = x_c[src_p] + x_c[dst_p]
        m_spec = pl.BlockSpec((tile, in_dim), lambda i: (i, 0))
        cost = pl.CostEstimate(
            flops=mlp_flops,
            transcendentals=0,
            bytes_accessed=E_pad * in_dim * csz + w_bytes + out_bytes,
        )
        out = pl.pallas_call(
            _mlp_kernel,
            out_shape=jax.ShapeDtypeStruct((E_pad, out_dim), out_dtype),
            grid_spec=pltpu.PrefetchScalarGridSpec(
                num_scalar_prefetch=0,
                grid=grid,
                in_specs=[m_spec, w1_spec, b_spec, w_spec, b_spec, w_spec, b_spec],
                out_specs=out_spec,
            ),
            compiler_params=compiler_params,
            cost_estimate=cost,
        )(m, w1c, b1f, w2c, b2f, w3c, b3f)

    # Slice off edge padding only (feature dims are unpadded).
    return out[:E] if E_pad != E else out


def _reference(atom_feats, src, dst, params):
    m = atom_feats[src] + atom_feats[dst]

    def lrelu(h):
        return jnp.where(h > 0, h, 0.01 * h)

    h = lrelu(m @ params["w1"] + params["b1"])
    h = lrelu(h @ params["w2"] + params["b2"])
    h = lrelu(h @ params["w3"] + params["b3"])
    return h


def init_params(key, in_dim, out_dim):
    ks = jax.random.split(key, 6)

    # Deterministic synthetic init (uniform, Kaiming-like bound as in nn.Linear).
    def uinit(k, shape, fan_in):
        bound = 1.0 / jnp.sqrt(fan_in)
        return jax.random.uniform(k, shape, jnp.float32, -bound, bound)

    return {
        "w1": uinit(ks[0], (in_dim, out_dim), in_dim),
        "b1": uinit(ks[1], (out_dim,), in_dim),
        "w2": uinit(ks[2], (out_dim, out_dim), out_dim),
        "b2": uinit(ks[3], (out_dim,), out_dim),
        "w3": uinit(ks[4], (out_dim, out_dim), out_dim),
        "b3": uinit(ks[5], (out_dim,), out_dim),
    }


if __name__ == "__main__":
    key = jax.random.PRNGKey(0)
    k_feat, k_src, k_dst, k_par = jax.random.split(key, 4)

    N = 16         # nodes
    E = 300        # edges (not a multiple of the tile -> exercises index padding)
    in_dim = 32
    out_dim = 32

    atom_feats = jax.random.normal(k_feat, (N, in_dim), jnp.float32)
    src = jax.random.randint(k_src, (E,), 0, N, jnp.int32)
    dst = jax.random.randint(k_dst, (E,), 0, N, jnp.int32)
    params = init_params(k_par, in_dim, out_dim)

    ref = _reference(atom_feats, src, dst, params)

    # 1) Default fast path: fused in-kernel gather, bf16 inputs, f32 accumulation.
    out_bf16 = jax.block_until_ready(dti_conv_graph3_v2(atom_feats, src, dst, params))
    assert out_bf16.shape == (E, out_dim), out_bf16.shape
    assert jnp.allclose(out_bf16, ref, atol=5e-2, rtol=5e-2), "bf16 fused mismatch"

    # 2) Full-precision fused path: must match the f32 reference tightly.
    out_f32 = jax.block_until_ready(
        dti_conv_graph3_v2(atom_feats, src, dst, params, compute_dtype=jnp.float32))
    assert jnp.allclose(out_f32, ref, atol=1e-5, rtol=1e-5), "f32 fused mismatch"

    # 3) Large-graph fallback (gather stays in XLA), forced here for coverage.
    out_fb = jax.block_until_ready(
        dti_conv_graph3_v2(atom_feats, src, dst, params,
                           compute_dtype=jnp.float32, fuse_gather=False))
    assert jnp.allclose(out_fb, ref, atol=1e-5, rtol=1e-5), "fallback mismatch"

    print("KERNEL_OK")
</pallas_src>

<mosaic_0001>
module attributes {stable_mosaic.version = 11 : i64} {
  func.func @_fused_kernel(%arg0: i32, %arg1: memref<256x1xi32, #tpu.memory_space<vmem>>, %arg2: memref<256x1xi32, #tpu.memory_space<vmem>>, %arg3: memref<16x32xbf16, #tpu.memory_space<vmem>>, %arg4: memref<32x32xbf16, #tpu.memory_space<vmem>>, %arg5: memref<1x32xf32, #tpu.memory_space<vmem>>, %arg6: memref<32x32xbf16, #tpu.memory_space<vmem>>, %arg7: memref<1x32xf32, #tpu.memory_space<vmem>>, %arg8: memref<32x32xbf16, #tpu.memory_space<vmem>>, %arg9: memref<1x32xf32, #tpu.memory_space<vmem>>, %arg10: memref<256x32xf32, #tpu.memory_space<vmem>>) attributes {dimension_semantics = [#tpu.dimension_semantics<parallel>], iteration_bounds = array<i64: 2>, scalar_prefetch = 0 : i64, scratch_operands = 0 : i64, tpu.core_type = #tpu.core_type<tc>, window_params = [{transform_indices = @transform_0, window_bounds = array<i64: 256, 1>}, {transform_indices = @transform_1, window_bounds = array<i64: 256, 1>}, {pipeline_mode = #tpu.pipeline_mode<synchronous>, transform_indices = @transform_2, window_bounds = array<i64: 16, 32>}, {pipeline_mode = #tpu.pipeline_mode<synchronous>, transform_indices = @transform_3, window_bounds = array<i64: 32, 32>}, {pipeline_mode = #tpu.pipeline_mode<synchronous>, transform_indices = @transform_4, window_bounds = array<i64: 1, 32>}, {pipeline_mode = #tpu.pipeline_mode<synchronous>, transform_indices = @transform_5, window_bounds = array<i64: 32, 32>}, {pipeline_mode = #tpu.pipeline_mode<synchronous>, transform_indices = @transform_6, window_bounds = array<i64: 1, 32>}, {pipeline_mode = #tpu.pipeline_mode<synchronous>, transform_indices = @transform_7, window_bounds = array<i64: 32, 32>}, {pipeline_mode = #tpu.pipeline_mode<synchronous>, transform_indices = @transform_8, window_bounds = array<i64: 1, 32>}, {transform_indices = @transform_9, window_bounds = array<i64: 256, 32>}]} {
    %0 = tpu.iota {dimensions = array<i32: 1>} : vector<256x16xi32>
    %c0 = arith.constant 0 : index
    %c0_0 = arith.constant 0 : index
    %1 = vector.load %arg1[%c0, %c0_0] : memref<256x1xi32, #tpu.memory_space<vmem>>, vector<256x1xi32>
    %2 = vector.broadcast %1 : vector<256x1xi32> to vector<256x16xi32>
    %3 = arith.cmpi eq, %0, %2 : vector<256x16xi32>
    %cst = arith.constant 1.000000e+00 : f32
    %cst_1 = arith.constant 0.000000e+00 : f32
    %4 = vector.broadcast %cst : f32 to vector<256x16xf32>
    %5 = vector.broadcast %cst_1 : f32 to vector<256x16xf32>
    %6 = arith.select %3, %4, %5 : vector<256x16xi1>, vector<256x16xf32>
    %c0_2 = arith.constant 0 : index
    %c0_3 = arith.constant 0 : index
    %7 = vector.load %arg2[%c0_2, %c0_3] : memref<256x1xi32, #tpu.memory_space<vmem>>, vector<256x1xi32>
    %8 = vector.broadcast %7 : vector<256x1xi32> to vector<256x16xi32>
    %9 = arith.cmpi eq, %0, %8 : vector<256x16xi32>
    %cst_4 = arith.constant 1.000000e+00 : f32
    %cst_5 = arith.constant 0.000000e+00 : f32
    %10 = vector.broadcast %cst_4 : f32 to vector<256x16xf32>
    %11 = vector.broadcast %cst_5 : f32 to vector<256x16xf32>
    %12 = arith.select %9, %10, %11 : vector<256x16xi1>, vector<256x16xf32>
    %13 = arith.addf %6, %12 : vector<256x16xf32>
    %14 = arith.truncf %13 : vector<256x16xf32> to vector<256x16xbf16>
    %c0_6 = arith.constant 0 : index
    %c0_7 = arith.constant 0 : index
    %15 = vector.load %arg3[%c0_6, %c0_7] : memref<16x32xbf16, #tpu.memory_space<vmem>>, vector<16x32xbf16>
    %cst_8 = arith.constant dense<0.000000e+00> : vector<256x32xf32>
    %16 = tpu.matmul %14, %15, %cst_8 {dimension_numbers = #tpu.dot_dimension_numbers<[1], [0], [0], [1], [0, 0, 1, 1], [], []>} : vector<256x16xbf16>, vector<16x32xbf16>, vector<256x32xf32> -> vector<256x32xf32>
    %17 = arith.truncf %16 : vector<256x32xf32> to vector<256x32xbf16>
    %c0_9 = arith.constant 0 : index
    %c0_10 = arith.constant 0 : index
    %18 = vector.load %arg4[%c0_9, %c0_10] : memref<32x32xbf16, #tpu.memory_space<vmem>>, vector<32x32xbf16>
    %cst_11 = arith.constant dense<0.000000e+00> : vector<256x32xf32>
    %19 = tpu.matmul %17, %18, %cst_11 {dimension_numbers = #tpu.dot_dimension_numbers<[1], [0], [0], [1], [0, 0, 1, 1], [], []>} : vector<256x32xbf16>, vector<32x32xbf16>, vector<256x32xf32> -> vector<256x32xf32>
    %c0_12 = arith.constant 0 : index
    %c0_13 = arith.constant 0 : index
    %20 = vector.load %arg5[%c0_12, %c0_13] : memref<1x32xf32, #tpu.memory_space<vmem>>, vector<1x32xf32>
    %21 = vector.broadcast %20 : vector<1x32xf32> to vector<256x32xf32>
    %22 = arith.addf %19, %21 : vector<256x32xf32>
    %cst_14 = arith.constant 0.000000e+00 : f32
    %23 = vector.broadcast %cst_14 : f32 to vector<256x32xf32>
    %24 = arith.cmpf ogt, %22, %23 : vector<256x32xf32>
    %cst_15 = arith.constant 0.00999999977 : f32
    %25 = vector.broadcast %cst_15 : f32 to vector<256x32xf32>
    %26 = arith.mulf %25, %22 : vector<256x32xf32>
    %27 = arith.select %24, %22, %26 : vector<256x32xi1>, vector<256x32xf32>
    %28 = arith.truncf %27 : vector<256x32xf32> to vector<256x32xbf16>
    %c0_16 = arith.constant 0 : index
    %c0_17 = arith.constant 0 : index
    %29 = vector.load %arg6[%c0_16, %c0_17] : memref<32x32xbf16, #tpu.memory_space<vmem>>, vector<32x32xbf16>
    %cst_18 = arith.constant dense<0.000000e+00> : vector<256x32xf32>
    %30 = tpu.matmul %28, %29, %cst_18 {dimension_numbers = #tpu.dot_dimension_numbers<[1], [0], [0], [1], [0, 0, 1, 1], [], []>} : vector<256x32xbf16>, vector<32x32xbf16>, vector<256x32xf32> -> vector<256x32xf32>
    %c0_19 = arith.constant 0 : index
    %c0_20 = arith.constant 0 : index
    %31 = vector.load %arg7[%c0_19, %c0_20] : memref<1x32xf32, #tpu.memory_space<vmem>>, vector<1x32xf32>
    %32 = vector.broadcast %31 : vector<1x32xf32> to vector<256x32xf32>
    %33 = arith.addf %30, %32 : vector<256x32xf32>
    %cst_21 = arith.constant 0.000000e+00 : f32
    %34 = vector.broadcast %cst_21 : f32 to vector<256x32xf32>
    %35 = arith.cmpf ogt, %33, %34 : vector<256x32xf32>
    %cst_22 = arith.constant 0.00999999977 : f32
    %36 = vector.broadcast %cst_22 : f32 to vector<256x32xf32>
    %37 = arith.mulf %36, %33 : vector<256x32xf32>
    %38 = arith.select %35, %33, %37 : vector<256x32xi1>, vector<256x32xf32>
    %39 = arith.truncf %38 : vector<256x32xf32> to vector<256x32xbf16>
    %c0_23 = arith.constant 0 : index
    %c0_24 = arith.constant 0 : index
    %40 = vector.load %arg8[%c0_23, %c0_24] : memref<32x32xbf16, #tpu.memory_space<vmem>>, vector<32x32xbf16>
    %cst_25 = arith.constant dense<0.000000e+00> : vector<256x32xf32>
    %41 = tpu.matmul %39, %40, %cst_25 {dimension_numbers = #tpu.dot_dimension_numbers<[1], [0], [0], [1], [0, 0, 1, 1], [], []>} : vector<256x32xbf16>, vector<32x32xbf16>, vector<256x32xf32> -> vector<256x32xf32>
    %c0_26 = arith.constant 0 : index
    %c0_27 = arith.constant 0 : index
    %42 = vector.load %arg9[%c0_26, %c0_27] : memref<1x32xf32, #tpu.memory_space<vmem>>, vector<1x32xf32>
    %43 = vector.broadcast %42 : vector<1x32xf32> to vector<256x32xf32>
    %44 = arith.addf %41, %43 : vector<256x32xf32>
    %cst_28 = arith.constant 0.000000e+00 : f32
    %45 = vector.broadcast %cst_28 : f32 to vector<256x32xf32>
    %46 = arith.cmpf ogt, %44, %45 : vector<256x32xf32>
    %cst_29 = arith.constant 0.00999999977 : f32
    %47 = vector.broadcast %cst_29 : f32 to vector<256x32xf32>
    %48 = arith.mulf %47, %44 : vector<256x32xf32>
    %49 = arith.select %46, %44, %48 : vector<256x32xi1>, vector<256x32xf32>
    %c0_30 = arith.constant 0 : index
    %c0_31 = arith.constant 0 : index
    %50 = vector.load %arg10[%c0_30, %c0_31] : memref<256x32xf32, #tpu.memory_space<vmem>>, vector<256x32xf32>
    tpu.vector_store %arg10[%c0_30, %c0_31], %49 {strides = array<i32>} : memref<256x32xf32, #tpu.memory_space<vmem>>, vector<256x32xf32>,
    return
  }
  func.func @transform_0(%arg0: i32) -> (i32, i32) {
    %c0_i32 = arith.constant 0 : i32
    %c0_i32_0 = arith.constant 0 : i32
    return %arg0, %c0_i32 : i32, i32
  }
  func.func @transform_1(%arg0: i32) -> (i32, i32) {
    %c0_i32 = arith.constant 0 : i32
    %c0_i32_0 = arith.constant 0 : i32
    return %arg0, %c0_i32 : i32, i32
  }
  func.func @transform_2(%arg0: i32) -> (i32, i32) {
    %c0_i32 = arith.constant 0 : i32
    %c0_i32_0 = arith.constant 0 : i32
    %c0_i32_1 = arith.constant 0 : i32
    return %c0_i32, %c0_i32_0 : i32, i32
  }
  func.func @transform_3(%arg0: i32) -> (i32, i32) {
    %c0_i32 = arith.constant 0 : i32
    %c0_i32_0 = arith.constant 0 : i32
    %c0_i32_1 = arith.constant 0 : i32
    return %c0_i32, %c0_i32_0 : i32, i32
  }
  func.func @transform_4(%arg0: i32) -> (i32, i32) {
    %c0_i32 = arith.constant 0 : i32
    %c0_i32_0 = arith.constant 0 : i32
    %c0_i32_1 = arith.constant 0 : i32
    return %c0_i32, %c0_i32_0 : i32, i32
  }
  func.func @transform_5(%arg0: i32) -> (i32, i32) {
    %c0_i32 = arith.constant 0 : i32
    %c0_i32_0 = arith.constant 0 : i32
    %c0_i32_1 = arith.constant 0 : i32
    return %c0_i32, %c0_i32_0 : i32, i32
  }
  func.func @transform_6(%arg0: i32) -> (i32, i32) {
    %c0_i32 = arith.constant 0 : i32
    %c0_i32_0 = arith.constant 0 : i32
    %c0_i32_1 = arith.constant 0 : i32
    return %c0_i32, %c0_i32_0 : i32, i32
  }
  func.func @transform_7(%arg0: i32) -> (i32, i32) {
    %c0_i32 = arith.constant 0 : i32
    %c0_i32_0 = arith.constant 0 : i32
    %c0_i32_1 = arith.constant 0 : i32
    return %c0_i32, %c0_i32_0 : i32, i32
  }
  func.func @transform_8(%arg0: i32) -> (i32, i32) {
    %c0_i32 = arith.constant 0 : i32
    %c0_i32_0 = arith.constant 0 : i32
    %c0_i32_1 = arith.constant 0 : i32
    return %c0_i32, %c0_i32_0 : i32, i32
  }
  func.func @transform_9(%arg0: i32) -> (i32, i32) {
    %c0_i32 = arith.constant 0 : i32
    %c0_i32_0 = arith.constant 0 : i32
    return %arg0, %c0_i32 : i32, i32
  }
}

</mosaic_0001>

<llo_original>
// kernel: dti_conv_graph3_v2.1
$region0: #{dti_conv_graph3_v2.1}
  #allocation0 [shape = 'u32[]', space=smem, size = 0x4, offset = 0x4, fixed_abs, tag = 'smem constant byte address 0x4 - core index']
  #allocation1 [shape = 'u32[144,128]{1,0:T(1,128)}', space=vmem, size = 0x12000, scoped, tag = 'internal scratch']
  %s0 = inlined_call_operand.vmem [shape: s32[512,1], index: 0, kind: input, shape index: {}]
  %s1 = inlined_call_operand.vmem [shape: s32[512,1], index: 1, kind: input, shape index: {}]
  %s2 = inlined_call_operand.vmem [shape: bf16[16,32], index: 2, kind: input, shape index: {}]
  %s3 = inlined_call_operand.vmem [shape: bf16[32,32], index: 3, kind: input, shape index: {}]
  %s4 = inlined_call_operand.vmem [shape: f32[1,32], index: 4, kind: input, shape index: {}]
  %s5 = inlined_call_operand.vmem [shape: bf16[32,32], index: 5, kind: input, shape index: {}]
  %s6 = inlined_call_operand.vmem [shape: f32[1,32], index: 6, kind: input, shape index: {}]
  %s7 = inlined_call_operand.vmem [shape: bf16[32,32], index: 7, kind: input, shape index: {}]
  %s8 = inlined_call_operand.vmem [shape: f32[1,32], index: 8, kind: input, shape index: {}]
  %s9 = inlined_call_operand.vmem [shape: f32[512,32], index: 9, kind: output, shape index: {}]
  %s10 = sld [smem:[#allocation0]]
  $region69: #{dti_conv_graph3_v2.1} parent=0
    _
  %s12 = ssub.s32 1, %s10
  %s13 = scalar_select 0, %s12, %s10
  loop: start=0, step=1, limit=4
  $region2: #{dti_conv_graph3_v2.1} parent=0 // loop_pre_header
    _
  $region3: #{dti_conv_graph3_v2.1} parent=0 // loop_header
    %s15 = sphi 0, %s19
    %p16 = scmp.ge.s32.totalorder %s15, 4
    %s25 = sphi 0, %s27
    %s28 = sphi 0, %s25
    %s29 = sphi 0, %s28
    %s45 = sphi 0, %s29
    %s51 = sphi 0, %s53
    %s54 = sphi 0, %s51
    %s55 = sphi 0, %s54
    %s71 = sphi 0, %s55
    %s75 = sphi 0, %s75
    %s77 = sphi 0, %s75
    %s78 = sphi 0, %s77
    %s92 = sphi 0, %s78
    %s96 = sphi 0, %s96
    %s98 = sphi 0, %s96
    %s99 = sphi 0, %s98
    %s113 = sphi 0, %s99
    %s117 = sphi 0, %s117
    %s119 = sphi 0, %s117
    %s120 = sphi 0, %s119
    %s134 = sphi 0, %s120
    %s138 = sphi 0, %s138
    %s140 = sphi 0, %s138
    %s141 = sphi 0, %s140
    %s155 = sphi 0, %s141
    %s159 = sphi 0, %s159
    %s161 = sphi 0, %s159
    %s162 = sphi 0, %s161
    %s176 = sphi 0, %s162
    %s180 = sphi 0, %s180
    %s182 = sphi 0, %s180
    %s183 = sphi 0, %s182
    %s197 = sphi 0, %s183
    %s201 = sphi 0, %s201
    %s203 = sphi 0, %s201
    %s204 = sphi 0, %s203
    %s218 = sphi 0, %s204
    %s224 = sphi 0, %s226
    %s227 = sphi 0, %s224
    %s228 = sphi 0, %s227
    %s244 = sphi 0, %s228
  $region4: #{dti_conv_graph3_v2.1} parent=0 // loop_header_branch
    %18 = sbr.rel (%p16) target = $region8
  $region5: #{dti_conv_graph3_v2.1} parent=0 // loop_body
    %s20 = ssub.s32 %s15, 1
    %s21 = ssub.s32 %s15, 2
    %s22 = sadd.s32 %s15, 1
    %s23 = ssub.s32 %s15, %s22
    %p24 = scmp.eq.s32.totalorder %s23, 0
    %s26 = sadd.s32 %s25, 1
    %s27 = scalar_select %p24, %s25, %s26
    %p30 = pneg %p24
    %p31 = scmp.eq.s32.totalorder %s15, 1
    %p32 = por %p30, %p31
    %p33 = scmp.ne.s32.totalorder %s25, %s28
    %p34 = scmp.eq.s32.totalorder %s15, 0
    %p35 = por %p33, %p34
    %p36 = scmp.ne.s32.totalorder %s25, %s28
    %p37 = scmp.eq.s32.totalorder %s20, 1
    %p38 = por %p36, %p37
    %p39 = scmp.ne.s32.totalorder %s28, %s29
    %p40 = scmp.eq.s32.totalorder %s20, 0
    %p41 = por %p39, %p40
    %p42 = scmp.ne.s32.totalorder %s28, %s29
    %p43 = scmp.eq.s32.totalorder %s21, 1
    %p44 = por %p42, %p43
    %p46 = scmp.ne.s32.totalorder %s29, %s45
    %p47 = scmp.eq.s32.totalorder %s21, 0
    %p48 = por %p46, %p47
    %s49 = ssub.s32 %s15, %s22
    %p50 = scmp.eq.s32.totalorder %s49, 0
    %s52 = sadd.s32 %s51, 1
    %s53 = scalar_select %p50, %s51, %s52
    %p56 = pneg %p50
    %p57 = scmp.eq.s32.totalorder %s15, 1
    %p58 = por %p56, %p57
    %p59 = scmp.ne.s32.totalorder %s51, %s54
    %p60 = scmp.eq.s32.totalorder %s15, 0
    %p61 = por %p59, %p60
    %p62 = scmp.ne.s32.totalorder %s51, %s54
    %p63 = scmp.eq.s32.totalorder %s20, 1
    %p64 = por %p62, %p63
    %p65 = scmp.ne.s32.totalorder %s54, %s55
    %p66 = scmp.eq.s32.totalorder %s20, 0
    %p67 = por %p65, %p66
    %p68 = scmp.ne.s32.totalorder %s54, %s55
    %p69 = scmp.eq.s32.totalorder %s21, 1
    %p70 = por %p68, %p69
    %p72 = scmp.ne.s32.totalorder %s55, %s71
    %p73 = scmp.eq.s32.totalorder %s21, 0
    %p74 = por %p72, %p73
    %s76 = sadd.s32 %s75, 1
    %p79 = scmp.eq.s32.totalorder %s15, 1
    %p80 = scmp.ne.s32.totalorder %s75, %s77
    %p81 = scmp.eq.s32.totalorder %s15, 0
    %p82 = por %p80, %p81
    %p83 = scmp.ne.s32.totalorder %s75, %s77
    %p84 = scmp.eq.s32.totalorder %s20, 1
    %p85 = por %p83, %p84
    %p86 = scmp.ne.s32.totalorder %s77, %s78
    %p87 = scmp.eq.s32.totalorder %s20, 0
    %p88 = por %p86, %p87
    %p89 = scmp.ne.s32.totalorder %s77, %s78
    %p90 = scmp.eq.s32.totalorder %s21, 1
    %p91 = por %p89, %p90
    %p93 = scmp.ne.s32.totalorder %s78, %s92
    %p94 = scmp.eq.s32.totalorder %s21, 0
    %p95 = por %p93, %p94
    %s97 = sadd.s32 %s96, 1
    %p100 = scmp.eq.s32.totalorder %s15, 1
    %p101 = scmp.ne.s32.totalorder %s96, %s98
    %p102 = scmp.eq.s32.totalorder %s15, 0
    %p103 = por %p101, %p102
    %p104 = scmp.ne.s32.totalorder %s96, %s98
    %p105 = scmp.eq.s32.totalorder %s20, 1
    %p106 = por %p104, %p105
    %p107 = scmp.ne.s32.totalorder %s98, %s99
    %p108 = scmp.eq.s32.totalorder %s20, 0
    %p109 = por %p107, %p108
    %p110 = scmp.ne.s32.totalorder %s98, %s99
    %p111 = scmp.eq.s32.totalorder %s21, 1
    %p112 = por %p110, %p111
    %p114 = scmp.ne.s32.totalorder %s99, %s113
    %p115 = scmp.eq.s32.totalorder %s21, 0
    %p116 = por %p114, %p115
    %s118 = sadd.s32 %s117, 1
    %p121 = scmp.eq.s32.totalorder %s15, 1
    %p122 = scmp.ne.s32.totalorder %s117, %s119
    %p123 = scmp.eq.s32.totalorder %s15, 0
    %p124 = por %p122, %p123
    %p125 = scmp.ne.s32.totalorder %s117, %s119
    %p126 = scmp.eq.s32.totalorder %s20, 1
    %p127 = por %p125, %p126
    %p128 = scmp.ne.s32.totalorder %s119, %s120
    %p129 = scmp.eq.s32.totalorder %s20, 0
    %p130 = por %p128, %p129
    %p131 = scmp.ne.s32.totalorder %s119, %s120
    %p132 = scmp.eq.s32.totalorder %s21, 1
    %p133 = por %p131, %p132
    %p135 = scmp.ne.s32.totalorder %s120, %s134
    %p136 = scmp.eq.s32.totalorder %s21, 0
    %p137 = por %p135, %p136
    %s139 = sadd.s32 %s138, 1
    %p142 = scmp.eq.s32.totalorder %s15, 1
    %p143 = scmp.ne.s32.totalorder %s138, %s140
    %p144 = scmp.eq.s32.totalorder %s15, 0
    %p145 = por %p143, %p144
    %p146 = scmp.ne.s32.totalorder %s138, %s140
    %p147 = scmp.eq.s32.totalorder %s20, 1
    %p148 = por %p146, %p147
    %p149 = scmp.ne.s32.totalorder %s140, %s141
    %p150 = scmp.eq.s32.totalorder %s20, 0
    %p151 = por %p149, %p150
    %p152 = scmp.ne.s32.totalorder %s140, %s141
    %p153 = scmp.eq.s32.totalorder %s21, 1
    %p154 = por %p152, %p153
    %p156 = scmp.ne.s32.totalorder %s141, %s155
    %p157 = scmp.eq.s32.totalorder %s21, 0
    %p158 = por %p156, %p157
    %s160 = sadd.s32 %s159, 1
    %p163 = scmp.eq.s32.totalorder %s15, 1
    %p164 = scmp.ne.s32.totalorder %s159, %s161
    %p165 = scmp.eq.s32.totalorder %s15, 0
    %p166 = por %p164, %p165
    %p167 = scmp.ne.s32.totalorder %s159, %s161
    %p168 = scmp.eq.s32.totalorder %s20, 1
    %p169 = por %p167, %p168
    %p170 = scmp.ne.s32.totalorder %s161, %s162
    %p171 = scmp.eq.s32.totalorder %s20, 0
    %p172 = por %p170, %p171
    %p173 = scmp.ne.s32.totalorder %s161, %s162
    %p174 = scmp.eq.s32.totalorder %s21, 1
    %p175 = por %p173, %p174
    %p177 = scmp.ne.s32.totalorder %s162, %s176
    %p178 = scmp.eq.s32.totalorder %s21, 0
    %p179 = por %p177, %p178
    %s181 = sadd.s32 %s180, 1
    %p184 = scmp.eq.s32.totalorder %s15, 1
    %p185 = scmp.ne.s32.totalorder %s180, %s182
    %p186 = scmp.eq.s32.totalorder %s15, 0
    %p187 = por %p185, %p186
    %p188 = scmp.ne.s32.totalorder %s180, %s182
    %p189 = scmp.eq.s32.totalorder %s20, 1
    %p190 = por %p188, %p189
    %p191 = scmp.ne.s32.totalorder %s182, %s183
    %p192 = scmp.eq.s32.totalorder %s20, 0
    %p193 = por %p191, %p192
    %p194 = scmp.ne.s32.totalorder %s182, %s183
    %p195 = scmp.eq.s32.totalorder %s21, 1
    %p196 = por %p194, %p195
    %p198 = scmp.ne.s32.totalorder %s183, %s197
    %p199 = scmp.eq.s32.totalorder %s21, 0
    %p200 = por %p198, %p199
    %s202 = sadd.s32 %s201, 1
    %p205 = scmp.eq.s32.totalorder %s15, 1
    %p206 = scmp.ne.s32.totalorder %s201, %s203
    %p207 = scmp.eq.s32.totalorder %s15, 0
    %p208 = por %p206, %p207
    %p209 = scmp.ne.s32.totalorder %s201, %s203
    %p210 = scmp.eq.s32.totalorder %s20, 1
    %p211 = por %p209, %p210
    %p212 = scmp.ne.s32.totalorder %s203, %s204
    %p213 = scmp.eq.s32.totalorder %s20, 0
    %p214 = por %p212, %p213
    %p215 = scmp.ne.s32.totalorder %s203, %s204
    %p216 = scmp.eq.s32.totalorder %s21, 1
    %p217 = por %p215, %p216
    %p219 = scmp.ne.s32.totalorder %s204, %s218
    %p220 = scmp.eq.s32.totalorder %s21, 0
    %p221 = por %p219, %p220
    %s222 = ssub.s32 %s15, %s22
    %p223 = scmp.eq.s32.totalorder %s222, 0
    %s225 = sadd.s32 %s224, 1
    %s226 = scalar_select %p223, %s224, %s225
    %p229 = pneg %p223
    %p230 = scmp.eq.s32.totalorder %s15, 1
    %p231 = por %p229, %p230
    %p232 = scmp.ne.s32.totalorder %s224, %s227
    %p233 = scmp.eq.s32.totalorder %s15, 0
    %p234 = por %p232, %p233
    %p235 = scmp.ne.s32.totalorder %s224, %s227
    %p236 = scmp.eq.s32.totalorder %s20, 1
    %p237 = por %p235, %p236
    %p238 = scmp.ne.s32.totalorder %s227, %s228
    %p239 = scmp.eq.s32.totalorder %s20, 0
    %p240 = por %p238, %p239
    %p241 = scmp.ne.s32.totalorder %s227, %s228
    %p242 = scmp.eq.s32.totalorder %s21, 1
    %p243 = por %p241, %p242
    %p245 = scmp.ne.s32.totalorder %s228, %s244
    %p246 = scmp.eq.s32.totalorder %s21, 0
    %p247 = por %p245, %p246
    %p248 = scmp.le.s32.totalorder 1, %s15
    %p249 = scmp.lt.s32.totalorder %s15, 3
    %p250 = pnand %p248, %p249
    %p251 = pneg %p250
    // Predicated region
    $region9: #{dti_conv_graph3_v2.1} parent=5 // pred_check
      _
    $region10: #{dti_conv_graph3_v2.1} parent=5 // pred_check_branch
      %253 = sbr.rel (%p250) target = $region12
    $region11: #{dti_conv_graph3_v2.1} parent=5 // pred_region
      %s254 = ssub.s32 %s15, 1
      // Predicated region
      $region13: #{dti_conv_graph3_v2.1} parent=11 // pred_check
        %p255 = pneg %p88
      $region14: #{dti_conv_graph3_v2.1} parent=11 // pred_check_branch
        %257 = sbr.rel (%p255) target = $region16
      $region15: #{dti_conv_graph3_v2.1} parent=11 // pred_region
        _
      $region16: #{dti_conv_graph3_v2.1} parent=11 // pred_fallthru
        _
      // Predicated region
      $region17: #{dti_conv_graph3_v2.1} parent=11 // pred_check
        %p258 = pneg %p109
      $region18: #{dti_conv_graph3_v2.1} parent=11 // pred_check_branch
        %260 = sbr.rel (%p258) target = $region20
      $region19: #{dti_conv_graph3_v2.1} parent=11 // pred_region
        _
      $region20: #{dti_conv_graph3_v2.1} parent=11 // pred_fallthru
        _
      // Predicated region
      $region21: #{dti_conv_graph3_v2.1} parent=11 // pred_check
        %p261 = pneg %p130
      $region22: #{dti_conv_graph3_v2.1} parent=11 // pred_check_branch
        %263 = sbr.rel (%p261) target = $region24
      $region23: #{dti_conv_graph3_v2.1} parent=11 // pred_region
        _
      $region24: #{dti_conv_graph3_v2.1} parent=11 // pred_fallthru
        _
      // Predicated region
      $region25: #{dti_conv_graph3_v2.1} parent=11 // pred_check
        %p264 = pneg %p151
      $region26: #{dti_conv_graph3_v2.1} parent=11 // pred_check_branch
        %266 = sbr.rel (%p264) target = $region28
      $region27: #{dti_conv_graph3_v2.1} parent=11 // pred_region
        _
      $region28: #{dti_conv_graph3_v2.1} parent=11 // pred_fallthru
        _
      // Predicated region
      $region29: #{dti_conv_graph3_v2.1} parent=11 // pred_check
        %p267 = pneg %p172
      $region30: #{dti_conv_graph3_v2.1} parent=11 // pred_check_branch
        %269 = sbr.rel (%p267) target = $region32
      $region31: #{dti_conv_graph3_v2.1} parent=11 // pred_region
        _
      $region32: #{dti_conv_graph3_v2.1} parent=11 // pred_fallthru
        _
      // Predicated region
      $region33: #{dti_conv_graph3_v2.1} parent=11 // pred_check
        %p270 = pneg %p193
      $region34: #{dti_conv_graph3_v2.1} parent=11 // pred_check_branch
        %272 = sbr.rel (%p270) target = $region36
      $region35: #{dti_conv_graph3_v2.1} parent=11 // pred_region
        _
      $region36: #{dti_conv_graph3_v2.1} parent=11 // pred_fallthru
        _
      // Predicated region
      $region37: #{dti_conv_graph3_v2.1} parent=11 // pred_check
        %p273 = pneg %p214
      $region38: #{dti_conv_graph3_v2.1} parent=11 // pred_check_branch
        %275 = sbr.rel (%p273) target = $region40
      $region39: #{dti_conv_graph3_v2.1} parent=11 // pred_region
        _
      $region40: #{dti_conv_graph3_v2.1} parent=11 // pred_fallthru
        _
    $region12: #{dti_conv_graph3_v2.1} parent=5 // pred_fallthru
      _
    %p276 = scmp.lt.s32.totalorder %s15, 2
    // Predicated region
    $region41: #{dti_conv_graph3_v2.1} parent=5 // pred_check
      %p277 = pneg %p276
    $region42: #{dti_conv_graph3_v2.1} parent=5 // pred_check_branch
      %279 = sbr.rel (%p277) target = $region44
    $region43: #{dti_conv_graph3_v2.1} parent=5 // pred_region
      // Predicated region
      $region45: #{dti_conv_graph3_v2.1} parent=43 // pred_check
        %p280 = pneg %p35
      $region46: #{dti_conv_graph3_v2.1} parent=43 // pred_check_branch
        %282 = sbr.rel (%p280) target = $region48
      $region47: #{dti_conv_graph3_v2.1} parent=43 // pred_region
        %s283 = smul.u32 32, %s15
        %p284 = scmp.lt.s32.totalorder %s283, 63
        %s285 = scalar_select %p284, %s283, 63
        %s286 = smul.addr %s285, 8
        %s287 = scalar_lea.vmem %s0, %s286
        %s288 = smul.u32 32, %s15
      $region48: #{dti_conv_graph3_v2.1} parent=43 // pred_fallthru
        _
      // Predicated region
      $region49: #{dti_conv_graph3_v2.1} parent=43 // pred_check
        %p289 = pneg %p61
      $region50: #{dti_conv_graph3_v2.1} parent=43 // pred_check_branch
        %291 = sbr.rel (%p289) target = $region52
      $region51: #{dti_conv_graph3_v2.1} parent=43 // pred_region
        %s292 = smul.u32 32, %s15
        %p293 = scmp.lt.s32.totalorder %s292, 63
        %s294 = scalar_select %p293, %s292, 63
        %s295 = smul.addr %s294, 8
        %s296 = scalar_lea.vmem %s1, %s295
        %s297 = smul.u32 32, %s15
      $region52: #{dti_conv_graph3_v2.1} parent=43 // pred_fallthru
        _
    $region44: #{dti_conv_graph3_v2.1} parent=5 // pred_fallthru
      _
    %p298 = scmp.le.s32.totalorder 1, %s15
    %p299 = scmp.lt.s32.totalorder %s15, 3
    %p300 = pnand %p298, %p299
    %p301 = pneg %p300
    // Predicated region
    $region53: #{dti_conv_graph3_v2.1} parent=5 // pred_check
      _
    $region54: #{dti_conv_graph3_v2.1} parent=5 // pred_check_branch
      %303 = sbr.rel (%p300) target = $region56
    $region55: #{dti_conv_graph3_v2.1} parent=5 // pred_region
      %s304 = ssub.s32 %s15, 1
      %s305 = smul.u32 32, %s20
      %p306 = scmp.lt.s32.totalorder %s305, 63
      %s307 = scalar_select %p306, %s305, 63
      %s308 = smul.addr %s307, 8
      %s309 = scalar_lea.vmem %s0, %s308
      %p310 = pneg %p41
      %p311 = pneg %p38
      %s312 = smul.u32 32, %s20
      %p313 = scmp.lt.s32.totalorder %s312, 63
      %s314 = scalar_select %p313, %s312, 63
      %s315 = smul.addr %s314, 8
      %s316 = scalar_lea.vmem %s1, %s315
      %p317 = pneg %p67
      %p318 = pneg %p64
      %p319 = pneg %p88
      %p320 = pneg %p85
      %p321 = pneg %p109
      %p322 = pneg %p106
      %p323 = pneg %p130
      %p324 = pneg %p127
      %p325 = pneg %p151
      %p326 = pneg %p148
      %p327 = pneg %p172
      %p328 = pneg %p169
      %p329 = pneg %p193
      %p330 = pneg %p190
      %p331 = pneg %p214
      %p332 = pneg %p211
      %p333 = pneg %p240
      %p334 = pneg %p237
      %s335 = smul.u32 32, %s20
      %p336 = scmp.lt.s32.totalorder %s335, 63
      %s337 = scalar_select %p336, %s335, 63
      %s338 = smul.addr %s337, 8
      %s339 = scalar_lea.vmem %s9, %s338
      %s340 = smul.u32 32, %s20
      %p341 = scmp.lt.s32.totalorder %s340, 63
      %s342 = scalar_select %p341, %s340, 63
      %s343 = smul.addr %s342, 8
      %s344 = scalar_lea.vmem %s0, %s343
      %s345 = smul.u32 32, %s20
      %s346 = smul.u32 32, %s20
      %p347 = scmp.lt.s32.totalorder %s346, 63
      %s348 = scalar_select %p347, %s346, 63
      %s349 = smul.addr %s348, 8
      %s350 = scalar_lea.vmem %s1, %s349
      %s351 = smul.u32 32, %s20
      %s352 = smul.u32 32, %s20
      %p353 = scmp.lt.s32.totalorder %s352, 63
      %s354 = scalar_select %p353, %s352, 63
      %s355 = smul.addr %s354, 8
      %s356 = scalar_lea.vmem %s9, %s355
      %s357 = smul.u32 32, %s20
      %v359 = vlaneseq
      %v360 = vand.u32 %v359, 127
      %v361 = vld [vmem:[%s344] sm:$0xff]
      %v362 = vld [vmem:[%s344 + $0x8] sm:$0xff]
      %v363 = vld [vmem:[%s344 + $0x10] sm:$0xff]
      %v364 = vld [vmem:[%s344 + $0x18] sm:$0xff]
      %v365 = vld [vmem:[%s344 + $0x20] sm:$0xff]
      %v366 = vld [vmem:[%s344 + $0x28] sm:$0xff]
      %v367 = vld [vmem:[%s344 + $0x30] sm:$0xff]
      %v368 = vld [vmem:[%s344 + $0x38] sm:$0xff]
      %v369 = vld [vmem:[%s344 + $0x40] sm:$0xff]
      %v370 = vld [vmem:[%s344 + $0x48] sm:$0xff]
      %v371 = vld [vmem:[%s344 + $0x50] sm:$0xff]
      %v372 = vld [vmem:[%s344 + $0x58] sm:$0xff]
      %v373 = vld [vmem:[%s344 + $0x60] sm:$0xff]
      %v374 = vld [vmem:[%s344 + $0x68] sm:$0xff]
      %v375 = vld [vmem:[%s344 + $0x70] sm:$0xff]
      %v376 = vld [vmem:[%s344 + $0x78] sm:$0xff]
      %v377 = vld [vmem:[%s344 + $0x80] sm:$0xff]
      %v378 = vld [vmem:[%s344 + $0x88] sm:$0xff]
      %v379 = vld [vmem:[%s344 + $0x90] sm:$0xff]
      %v380 = vld [vmem:[%s344 + $0x98] sm:$0xff]
      %v381 = vld [vmem:[%s344 + $0xa0] sm:$0xff]
      %v382 = vld [vmem:[%s344 + $0xa8] sm:$0xff]
      %v383 = vld [vmem:[%s344 + $0xb0] sm:$0xff]
      %v384 = vld [vmem:[%s344 + $0xb8] sm:$0xff]
      %v385 = vld [vmem:[%s344 + $0xc0] sm:$0xff]
      %v386 = vld [vmem:[%s344 + $0xc8] sm:$0xff]
      %v387 = vld [vmem:[%s344 + $0xd0] sm:$0xff]
      %v388 = vld [vmem:[%s344 + $0xd8] sm:$0xff]
      %v389 = vld [vmem:[%s344 + $0xe0] sm:$0xff]
      %v390 = vld [vmem:[%s344 + $0xe8] sm:$0xff]
      %v391 = vld [vmem:[%s344 + $0xf0] sm:$0xff]
      %v392 = vld [vmem:[%s344 + $0xf8] sm:$0xff]
      %393 = vset.pattern.permute.xlu0 0
      %394 = vperm.xlu0 %393, %v361
      %v395 = vpop.permute.xlu0 %394
      %396 = vset.pattern.permute.xlu0 0
      %397 = vperm.xlu0 %396, %v362
      %v398 = vpop.permute.xlu0 %397
      %399 = vset.pattern.permute.xlu0 0
      %400 = vperm.xlu0 %399, %v363
      %v401 = vpop.permute.xlu0 %400
      %402 = vset.pattern.permute.xlu0 0
      %403 = vperm.xlu0 %402, %v364
      %v404 = vpop.permute.xlu0 %403
      %405 = vset.pattern.permute.xlu0 0
      %406 = vperm.xlu0 %405, %v365
      %v407 = vpop.permute.xlu0 %406
      %408 = vset.pattern.permute.xlu0 0
      %409 = vperm.xlu0 %408, %v366
      %v410 = vpop.permute.xlu0 %409
      %411 = vset.pattern.permute.xlu0 0
      %412 = vperm.xlu0 %411, %v367
      %v413 = vpop.permute.xlu0 %412
      %414 = vset.pattern.permute.xlu0 0
      %415 = vperm.xlu0 %414, %v368
      %v416 = vpop.permute.xlu0 %415
      %417 = vset.pattern.permute.xlu0 0
      %418 = vperm.xlu0 %417, %v369
      %v419 = vpop.permute.xlu0 %418
      %420 = vset.pattern.permute.xlu0 0
      %421 = vperm.xlu0 %420, %v370
      %v422 = vpop.permute.xlu0 %421
      %423 = vset.pattern.permute.xlu0 0
      %424 = vperm.xlu0 %423, %v371
      %v425 = vpop.permute.xlu0 %424
      %426 = vset.pattern.permute.xlu0 0
      %427 = vperm.xlu0 %426, %v372
      %v428 = vpop.permute.xlu0 %427
      %429 = vset.pattern.permute.xlu0 0
      %430 = vperm.xlu0 %429, %v373
      %v431 = vpop.permute.xlu0 %430
      %432 = vset.pattern.permute.xlu0 0
      %433 = vperm.xlu0 %432, %v374
      %v434 = vpop.permute.xlu0 %433
      %435 = vset.pattern.permute.xlu0 0
      %436 = vperm.xlu0 %435, %v375
      %v437 = vpop.permute.xlu0 %436
      %438 = vset.pattern.permute.xlu0 0
      %439 = vperm.xlu0 %438, %v376
      %v440 = vpop.permute.xlu0 %439
      %441 = vset.pattern.permute.xlu0 0
      %442 = vperm.xlu0 %441, %v377
      %v443 = vpop.permute.xlu0 %442
      %444 = vset.pattern.permute.xlu0 0
      %445 = vperm.xlu0 %444, %v378
      %v446 = vpop.permute.xlu0 %445
      %447 = vset.pattern.permute.xlu0 0
      %448 = vperm.xlu0 %447, %v379
      %v449 = vpop.permute.xlu0 %448
      %450 = vset.pattern.permute.xlu0 0
      %451 = vperm.xlu0 %450, %v380
      %v452 = vpop.permute.xlu0 %451
      %453 = vset.pattern.permute.xlu0 0
      %454 = vperm.xlu0 %453, %v381
      %v455 = vpop.permute.xlu0 %454
      %456 = vset.pattern.permute.xlu0 0
      %457 = vperm.xlu0 %456, %v382
      %v458 = vpop.permute.xlu0 %457
      %459 = vset.pattern.permute.xlu0 0
      %460 = vperm.xlu0 %459, %v383
      %v461 = vpop.permute.xlu0 %460
      %462 = vset.pattern.permute.xlu0 0
      %463 = vperm.xlu0 %462, %v384
      %v464 = vpop.permute.xlu0 %463
      %465 = vset.pattern.permute.xlu0 0
      %466 = vperm.xlu0 %465, %v385
      %v467 = vpop.permute.xlu0 %466
      %468 = vset.pattern.permute.xlu0 0
      %469 = vperm.xlu0 %468, %v386
      %v470 = vpop.permute.xlu0 %469
      %471 = vset.pattern.permute.xlu0 0
      %472 = vperm.xlu0 %471, %v387
      %v473 = vpop.permute.xlu0 %472
      %474 = vset.pattern.permute.xlu0 0
      %475 = vperm.xlu0 %474, %v388
      %v476 = vpop.permute.xlu0 %475
      %477 = vset.pattern.permute.xlu0 0
      %478 = vperm.xlu0 %477, %v389
      %v479 = vpop.permute.xlu0 %478
      %480 = vset.pattern.permute.xlu0 0
      %481 = vperm.xlu0 %480, %v390
      %v482 = vpop.permute.xlu0 %481
      %483 = vset.pattern.permute.xlu0 0
      %484 = vperm.xlu0 %483, %v391
      %v485 = vpop.permute.xlu0 %484
      %486 = vset.pattern.permute.xlu0 0
      %487 = vperm.xlu0 %486, %v392
      %v488 = vpop.permute.xlu0 %487
      %vm489 = vcmp.eq.s32.totalorder %v360, %v395
      %vm490 = vcmp.eq.s32.totalorder %v360, %v398
      %vm491 = vcmp.eq.s32.totalorder %v360, %v401
      %vm492 = vcmp.eq.s32.totalorder %v360, %v404
      %vm493 = vcmp.eq.s32.totalorder %v360, %v407
      %vm494 = vcmp.eq.s32.totalorder %v360, %v410
      %vm495 = vcmp.eq.s32.totalorder %v360, %v413
      %vm496 = vcmp.eq.s32.totalorder %v360, %v416
      %vm497 = vcmp.eq.s32.totalorder %v360, %v419
      %vm498 = vcmp.eq.s32.totalorder %v360, %v422
      %vm499 = vcmp.eq.s32.totalorder %v360, %v425
      %vm500 = vcmp.eq.s32.totalorder %v360, %v428
      %vm501 = vcmp.eq.s32.totalorder %v360, %v431
      %vm502 = vcmp.eq.s32.totalorder %v360, %v434
      %vm503 = vcmp.eq.s32.totalorder %v360, %v437
      %vm504 = vcmp.eq.s32.totalorder %v360, %v440
      %vm505 = vcmp.eq.s32.totalorder %v360, %v443
      %vm506 = vcmp.eq.s32.totalorder %v360, %v446
      %vm507 = vcmp.eq.s32.totalorder %v360, %v449
      %vm508 = vcmp.eq.s32.totalorder %v360, %v452
      %vm509 = vcmp.eq.s32.totalorder %v360, %v455
      %vm510 = vcmp.eq.s32.totalorder %v360, %v458
      %vm511 = vcmp.eq.s32.totalorder %v360, %v461
      %vm512 = vcmp.eq.s32.totalorder %v360, %v464
      %vm513 = vcmp.eq.s32.totalorder %v360, %v467
      %vm514 = vcmp.eq.s32.totalorder %v360, %v470
      %vm515 = vcmp.eq.s32.totalorder %v360, %v473
      %vm516 = vcmp.eq.s32.totalorder %v360, %v476
      %vm517 = vcmp.eq.s32.totalorder %v360, %v479
      %vm518 = vcmp.eq.s32.totalorder %v360, %v482
      %vm519 = vcmp.eq.s32.totalorder %v360, %v485
      %vm520 = vcmp.eq.s32.totalorder %v360, %v488
      %v521 = vsel %vm489, 1.0, 0.0
      %v522 = vsel %vm490, 1.0, 0.0
      %v523 = vsel %vm491, 1.0, 0.0
      %v524 = vsel %vm492, 1.0, 0.0
      %v525 = vsel %vm493, 1.0, 0.0
      %v526 = vsel %vm494, 1.0, 0.0
      %v527 = vsel %vm495, 1.0, 0.0
      %v528 = vsel %vm496, 1.0, 0.0
      %v529 = vsel %vm497, 1.0, 0.0
      %v530 = vsel %vm498, 1.0, 0.0
      %v531 = vsel %vm499, 1.0, 0.0
      %v532 = vsel %vm500, 1.0, 0.0
      %v533 = vsel %vm501, 1.0, 0.0
      %v534 = vsel %vm502, 1.0, 0.0
      %v535 = vsel %vm503, 1.0, 0.0
      %v536 = vsel %vm504, 1.0, 0.0
      %v537 = vsel %vm505, 1.0, 0.0
      %v538 = vsel %vm506, 1.0, 0.0
      %v539 = vsel %vm507, 1.0, 0.0
      %v540 = vsel %vm508, 1.0, 0.0
      %v541 = vsel %vm509, 1.0, 0.0
      %v542 = vsel %vm510, 1.0, 0.0
      %v543 = vsel %vm511, 1.0, 0.0
      %v544 = vsel %vm512, 1.0, 0.0
      %v545 = vsel %vm513, 1.0, 0.0
      %v546 = vsel %vm514, 1.0, 0.0
      %v547 = vsel %vm515, 1.0, 0.0
      %v548 = vsel %vm516, 1.0, 0.0
      %v549 = vsel %vm517, 1.0, 0.0
      %v550 = vsel %vm518, 1.0, 0.0
      %v551 = vsel %vm519, 1.0, 0.0
      %v552 = vsel %vm520, 1.0, 0.0
      %v553 = vld [vmem:[%s350] sm:$0xff]
      %v554 = vld [vmem:[%s350 + $0x8] sm:$0xff]
      %v555 = vld [vmem:[%s350 + $0x10] sm:$0xff]
      %v556 = vld [vmem:[%s350 + $0x18] sm:$0xff]
      %v557 = vld [vmem:[%s350 + $0x20] sm:$0xff]
      %v558 = vld [vmem:[%s350 + $0x28] sm:$0xff]
      %v559 = vld [vmem:[%s350 + $0x30] sm:$0xff]
      %v560 = vld [vmem:[%s350 + $0x38] sm:$0xff]
      %v561 = vld [vmem:[%s350 + $0x40] sm:$0xff]
      %v562 = vld [vmem:[%s350 + $0x48] sm:$0xff]
      %v563 = vld [vmem:[%s350 + $0x50] sm:$0xff]
      %v564 = vld [vmem:[%s350 + $0x58] sm:$0xff]
      %v565 = vld [vmem:[%s350 + $0x60] sm:$0xff]
      %v566 = vld [vmem:[%s350 + $0x68] sm:$0xff]
      %v567 = vld [vmem:[%s350 + $0x70] sm:$0xff]
      %v568 = vld [vmem:[%s350 + $0x78] sm:$0xff]
      %v569 = vld [vmem:[%s350 + $0x80] sm:$0xff]
      %v570 = vld [vmem:[%s350 + $0x88] sm:$0xff]
      %v571 = vld [vmem:[%s350 + $0x90] sm:$0xff]
      %v572 = vld [vmem:[%s350 + $0x98] sm:$0xff]
      %v573 = vld [vmem:[%s350 + $0xa0] sm:$0xff]
      %v574 = vld [vmem:[%s350 + $0xa8] sm:$0xff]
      %v575 = vld [vmem:[%s350 + $0xb0] sm:$0xff]
      %v576 = vld [vmem:[%s350 + $0xb8] sm:$0xff]
      %v577 = vld [vmem:[%s350 + $0xc0] sm:$0xff]
      %v578 = vld [vmem:[%s350 + $0xc8] sm:$0xff]
      %v579 = vld [vmem:[%s350 + $0xd0] sm:$0xff]
      %v580 = vld [vmem:[%s350 + $0xd8] sm:$0xff]
      %v581 = vld [vmem:[%s350 + $0xe0] sm:$0xff]
      %v582 = vld [vmem:[%s350 + $0xe8] sm:$0xff]
      %v583 = vld [vmem:[%s350 + $0xf0] sm:$0xff]
      %v584 = vld [vmem:[%s350 + $0xf8] sm:$0xff]
      %585 = vset.pattern.permute.xlu0 0
      %586 = vperm.xlu0 %585, %v553
      %v587 = vpop.permute.xlu0 %586
      %588 = vset.pattern.permute.xlu0 0
      %589 = vperm.xlu0 %588, %v554
      %v590 = vpop.permute.xlu0 %589
      %591 = vset.pattern.permute.xlu0 0
      %592 = vperm.xlu0 %591, %v555
      %v593 = vpop.permute.xlu0 %592
      %594 = vset.pattern.permute.xlu0 0
      %595 = vperm.xlu0 %594, %v556
      %v596 = vpop.permute.xlu0 %595
      %597 = vset.pattern.permute.xlu0 0
      %598 = vperm.xlu0 %597, %v557
      %v599 = vpop.permute.xlu0 %598
      %600 = vset.pattern.permute.xlu0 0
      %601 = vperm.xlu0 %600, %v558
      %v602 = vpop.permute.xlu0 %601
      %603 = vset.pattern.permute.xlu0 0
      %604 = vperm.xlu0 %603, %v559
      %v605 = vpop.permute.xlu0 %604
      %606 = vset.pattern.permute.xlu0 0
      %607 = vperm.xlu0 %606, %v560
      %v608 = vpop.permute.xlu0 %607
      %609 = vset.pattern.permute.xlu0 0
      %610 = vperm.xlu0 %609, %v561
      %v611 = vpop.permute.xlu0 %610
      %612 = vset.pattern.permute.xlu0 0
      %613 = vperm.xlu0 %612, %v562
      %v614 = vpop.permute.xlu0 %613
      %615 = vset.pattern.permute.xlu0 0
      %616 = vperm.xlu0 %615, %v563
      %v617 = vpop.permute.xlu0 %616
      %618 = vset.pattern.permute.xlu0 0
      %619 = vperm.xlu0 %618, %v564
      %v620 = vpop.permute.xlu0 %619
      %621 = vset.pattern.permute.xlu0 0
      %622 = vperm.xlu0 %621, %v565
      %v623 = vpop.permute.xlu0 %622
      %624 = vset.pattern.permute.xlu0 0
      %625 = vperm.xlu0 %624, %v566
      %v626 = vpop.permute.xlu0 %625
      %627 = vset.pattern.permute.xlu0 0
      %628 = vperm.xlu0 %627, %v567
      %v629 = vpop.permute.xlu0 %628
      %630 = vset.pattern.permute.xlu0 0
      %631 = vperm.xlu0 %630, %v568
      %v632 = vpop.permute.xlu0 %631
      %633 = vset.pattern.permute.xlu0 0
      %634 = vperm.xlu0 %633, %v569
      %v635 = vpop.permute.xlu0 %634
      %636 = vset.pattern.permute.xlu0 0
      %637 = vperm.xlu0 %636, %v570
      %v638 = vpop.permute.xlu0 %637
      %639 = vset.pattern.permute.xlu0 0
      %640 = vperm.xlu0 %639, %v571
      %v641 = vpop.permute.xlu0 %640
      %642 = vset.pattern.permute.xlu0 0
      %643 = vperm.xlu0 %642, %v572
      %v644 = vpop.permute.xlu0 %643
      %645 = vset.pattern.permute.xlu0 0
      %646 = vperm.xlu0 %645, %v573
      %v647 = vpop.permute.xlu0 %646
      %648 = vset.pattern.permute.xlu0 0
      %649 = vperm.xlu0 %648, %v574
      %v650 = vpop.permute.xlu0 %649
      %651 = vset.pattern.permute.xlu0 0
      %652 = vperm.xlu0 %651, %v575
      %v653 = vpop.permute.xlu0 %652
      %654 = vset.pattern.permute.xlu0 0
      %655 = vperm.xlu0 %654, %v576
      %v656 = vpop.permute.xlu0 %655
      %657 = vset.pattern.permute.xlu0 0
      %658 = vperm.xlu0 %657, %v577
      %v659 = vpop.permute.xlu0 %658
      %660 = vset.pattern.permute.xlu0 0
      %661 = vperm.xlu0 %660, %v578
      %v662 = vpop.permute.xlu0 %661
      %663 = vset.pattern.permute.xlu0 0
      %664 = vperm.xlu0 %663, %v579
      %v665 = vpop.permute.xlu0 %664
      %666 = vset.pattern.permute.xlu0 0
      %667 = vperm.xlu0 %666, %v580
      %v668 = vpop.permute.xlu0 %667
      %669 = vset.pattern.permute.xlu0 0
      %670 = vperm.xlu0 %669, %v581
      %v671 = vpop.permute.xlu0 %670
      %672 = vset.pattern.permute.xlu0 0
      %673 = vperm.xlu0 %672, %v582
      %v674 = vpop.permute.xlu0 %673
      %675 = vset.pattern.permute.xlu0 0
      %676 = vperm.xlu0 %675, %v583
      %v677 = vpop.permute.xlu0 %676
      %678 = vset.pattern.permute.xlu0 0
      %679 = vperm.xlu0 %678, %v584
      %v680 = vpop.permute.xlu0 %679
      %vm681 = vcmp.eq.s32.totalorder %v360, %v587
      %vm682 = vcmp.eq.s32.totalorder %v360, %v590
      %vm683 = vcmp.eq.s32.totalorder %v360, %v593
      %vm684 = vcmp.eq.s32.totalorder %v360, %v596
      %vm685 = vcmp.eq.s32.totalorder %v360, %v599
      %vm686 = vcmp.eq.s32.totalorder %v360, %v602
      %vm687 = vcmp.eq.s32.totalorder %v360, %v605
      %vm688 = vcmp.eq.s32.totalorder %v360, %v608
      %vm689 = vcmp.eq.s32.totalorder %v360, %v611
      %vm690 = vcmp.eq.s32.totalorder %v360, %v614
      %vm691 = vcmp.eq.s32.totalorder %v360, %v617
      %vm692 = vcmp.eq.s32.totalorder %v360, %v620
      %vm693 = vcmp.eq.s32.totalorder %v360, %v623
      %vm694 = vcmp.eq.s32.totalorder %v360, %v626
      %vm695 = vcmp.eq.s32.totalorder %v360, %v629
      %vm696 = vcmp.eq.s32.totalorder %v360, %v632
      %vm697 = vcmp.eq.s32.totalorder %v360, %v635
      %vm698 = vcmp.eq.s32.totalorder %v360, %v638
      %vm699 = vcmp.eq.s32.totalorder %v360, %v641
      %vm700 = vcmp.eq.s32.totalorder %v360, %v644
      %vm701 = vcmp.eq.s32.totalorder %v360, %v647
      %vm702 = vcmp.eq.s32.totalorder %v360, %v650
      %vm703 = vcmp.eq.s32.totalorder %v360, %v653
      %vm704 = vcmp.eq.s32.totalorder %v360, %v656
      %vm705 = vcmp.eq.s32.totalorder %v360, %v659
      %vm706 = vcmp.eq.s32.totalorder %v360, %v662
      %vm707 = vcmp.eq.s32.totalorder %v360, %v665
      %vm708 = vcmp.eq.s32.totalorder %v360, %v668
      %vm709 = vcmp.eq.s32.totalorder %v360, %v671
      %vm710 = vcmp.eq.s32.totalorder %v360, %v674
      %vm711 = vcmp.eq.s32.totalorder %v360, %v677
      %vm712 = vcmp.eq.s32.totalorder %v360, %v680
      %v713 = vsel %vm681, 1.0, 0.0
      %v714 = vsel %vm682, 1.0, 0.0
      %v715 = vsel %vm683, 1.0, 0.0
      %v716 = vsel %vm684, 1.0, 0.0
      %v717 = vsel %vm685, 1.0, 0.0
      %v718 = vsel %vm686, 1.0, 0.0
      %v719 = vsel %vm687, 1.0, 0.0
      %v720 = vsel %vm688, 1.0, 0.0
      %v721 = vsel %vm689, 1.0, 0.0
      %v722 = vsel %vm690, 1.0, 0.0
      %v723 = vsel %vm691, 1.0, 0.0
      %v724 = vsel %vm692, 1.0, 0.0
      %v725 = vsel %vm693, 1.0, 0.0
      %v726 = vsel %vm694, 1.0, 0.0
      %v727 = vsel %vm695, 1.0, 0.0
      %v728 = vsel %vm696, 1.0, 0.0
      %v729 = vsel %vm697, 1.0, 0.0
      %v730 = vsel %vm698, 1.0, 0.0
      %v731 = vsel %vm699, 1.0, 0.0
      %v732 = vsel %vm700, 1.0, 0.0
      %v733 = vsel %vm701, 1.0, 0.0
      %v734 = vsel %vm702, 1.0, 0.0
      %v735 = vsel %vm703, 1.0, 0.0
      %v736 = vsel %vm704, 1.0, 0.0
      %v737 = vsel %vm705, 1.0, 0.0
      %v738 = vsel %vm706, 1.0, 0.0
      %v739 = vsel %vm707, 1.0, 0.0
      %v740 = vsel %vm708, 1.0, 0.0
      %v741 = vsel %vm709, 1.0, 0.0
      %v742 = vsel %vm710, 1.0, 0.0
      %v743 = vsel %vm711, 1.0, 0.0
      %v744 = vsel %vm712, 1.0, 0.0
      %v745 = vadd.f32 %v521, %v713
      %v746 = vadd.f32 %v522, %v714
      %v747 = vadd.f32 %v523, %v715
      %v748 = vadd.f32 %v524, %v716
      %v749 = vadd.f32 %v525, %v717
      %v750 = vadd.f32 %v526, %v718
      %v751 = vadd.f32 %v527, %v719
      %v752 = vadd.f32 %v528, %v720
      %v753 = vadd.f32 %v529, %v721
      %v754 = vadd.f32 %v530, %v722
      %v755 = vadd.f32 %v531, %v723
      %v756 = vadd.f32 %v532, %v724
      %v757 = vadd.f32 %v533, %v725
      %v758 = vadd.f32 %v534, %v726
      %v759 = vadd.f32 %v535, %v727
      %v760 = vadd.f32 %v536, %v728
      %v761 = vadd.f32 %v537, %v729
      %v762 = vadd.f32 %v538, %v730
      %v763 = vadd.f32 %v539, %v731
      %v764 = vadd.f32 %v540, %v732
      %v765 = vadd.f32 %v541, %v733
      %v766 = vadd.f32 %v542, %v734
      %v767 = vadd.f32 %v543, %v735
      %v768 = vadd.f32 %v544, %v736
      %v769 = vadd.f32 %v545, %v737
      %v770 = vadd.f32 %v546, %v738
      %v771 = vadd.f32 %v547, %v739
      %v772 = vadd.f32 %v548, %v740
      %v773 = vadd.f32 %v549, %v741
      %v774 = vadd.f32 %v550, %v742
      %v775 = vadd.f32 %v551, %v743
      %v776 = vadd.f32 %v552, %v744
      %v777 = vpack.c.bf16 %v746, %v745
      %v778 = vpack.c.bf16 %v748, %v747
      %v779 = vpack.c.bf16 %v750, %v749
      %v780 = vpack.c.bf16 %v752, %v751
      %v781 = vpack.c.bf16 %v754, %v753
      %v782 = vpack.c.bf16 %v756, %v755
      %v783 = vpack.c.bf16 %v758, %v757
      %v784 = vpack.c.bf16 %v760, %v759
      %v785 = vpack.c.bf16 %v762, %v761
      %v786 = vpack.c.bf16 %v764, %v763
      %v787 = vpack.c.bf16 %v766, %v765
      %v788 = vpack.c.bf16 %v768, %v767
      %v789 = vpack.c.bf16 %v770, %v769
      %v790 = vpack.c.bf16 %v772, %v771
      %v791 = vpack.c.bf16 %v774, %v773
      %v792 = vpack.c.bf16 %v776, %v775
      %v793 = vld [vmem:[%s2] sm:$0xf]
      %v794 = vld [vmem:[%s2 + $0x4] sm:$0xf]
      %v797 = vunpack.c.l.b16 %v793
      %v798 = vunpack.c.l.b16 %v794
      %v799 = vpack.c.b16 %v798, %v797
      %vm801 = vcmask 130048
      %v803 = vsel %vm801, %v777, 0
      %v806 = vsel %vm801, %v778, 0
      %v809 = vsel %vm801, %v779, 0
      %v812 = vsel %vm801, %v780, 0
      %v815 = vsel %vm801, %v781, 0
      %v818 = vsel %vm801, %v782, 0
      %v821 = vsel %vm801, %v783, 0
      %v824 = vsel %vm801, %v784, 0
      %v827 = vsel %vm801, %v785, 0
      %v830 = vsel %vm801, %v786, 0
      %v833 = vsel %vm801, %v787, 0
      %v836 = vsel %vm801, %v788, 0
      %v839 = vsel %vm801, %v789, 0
      %v842 = vsel %vm801, %v790, 0
      %v845 = vsel %vm801, %v791, 0
      %v848 = vsel %vm801, %v792, 0
      %850 = vmatprep.subr.bf16.mxu0 0
      %851 = vmatpush1.bf16.msra.mxu0 %v799
      %852 = vmatprep.subr.bf16.mxu0 0
      %853 = vmatpush1.bf16.msra.mxu0 0
      %854 = vmatprep.subr.bf16.mxu0 0
      %855 = vmatpush1.bf16.msra.mxu0 0
      %856 = vmatprep.subr.bf16.mxu0 0
      %857 = vmatpush1.bf16.msra.mxu0 0
      %858 = vmatprep.subr.bf16.mxu0 0
      %859 = vmatpush1.bf16.msra.mxu0 0
      %860 = vmatprep.subr.bf16.mxu0 0
      %861 = vmatpush1.bf16.msra.mxu0 0
      %862 = vmatprep.subr.bf16.mxu0 0
      %863 = vmatpush1.bf16.msra.mxu0 0
      %864 = vmatprep.subr.bf16.mxu0 0
      %865 = vmatpush1.bf16.msra.mxu0 0
      %866 = vmatprep.subr.bf16.mxu0 0
      %867 = vmatpush1.bf16.msra.mxu0 0
      %868 = vmatprep.subr.bf16.mxu0 0
      %869 = vmatpush1.bf16.msra.mxu0 0
      %870 = vmatprep.subr.bf16.mxu0 0
      %871 = vmatpush1.bf16.msra.mxu0 0
      %872 = vmatprep.subr.bf16.mxu0 0
      %873 = vmatpush1.bf16.msra.mxu0 0
      %874 = vmatprep.subr.bf16.mxu0 0
      %875 = vmatpush1.bf16.msra.mxu0 0
      %876 = vmatprep.subr.bf16.mxu0 0
      %877 = vmatpush1.bf16.msra.mxu0 0
      %878 = vmatprep.subr.bf16.mxu0 0
      %879 = vmatpush1.bf16.msra.mxu0 0
      %880 = vmatprep.subr.bf16.mxu0 0
      %881 = vmatpush1.bf16.msra.mxu0 0
      %882 = vmatprep.mubr.bf16.mxu0 0
      %883 = vmatmul.mubr.bf16.gmra.mrb[0].mxu0 %v803
      %v884 = vpop.f32.mrb[0].mxu0
      %v885 = vadd.f32 0.0, %v884
      %v886 = vpop.f32.mrb[0].mxu0
      %v887 = vpop.f32.mrb[0].mxu0
      %v888 = vadd.f32 0.0, %v887
      %v889 = vpop.f32.mrb[0].mxu0
      %890 = vmatprep.mubr.bf16.mxu0 0
      %891 = vmatmul.mubr.bf16.gmra.mrb[0].mxu0 %v806
      %v892 = vpop.f32.mrb[0].mxu0
      %v893 = vadd.f32 0.0, %v892
      %v894 = vpop.f32.mrb[0].mxu0
      %v895 = vpop.f32.mrb[0].mxu0
      %v896 = vadd.f32 0.0, %v895
      %v897 = vpop.f32.mrb[0].mxu0
      %898 = vmatprep.mubr.bf16.mxu0 0
      %899 = vmatmul.mubr.bf16.gmra.mrb[0].mxu0 %v809
      %v900 = vpop.f32.mrb[0].mxu0
      %v901 = vadd.f32 0.0, %v900
      %v902 = vpop.f32.mrb[0].mxu0
      %v903 = vpop.f32.mrb[0].mxu0
      %v904 = vadd.f32 0.0, %v903
      %v905 = vpop.f32.mrb[0].mxu0
      %906 = vmatprep.mubr.bf16.mxu0 0
      %907 = vmatmul.mubr.bf16.gmra.mrb[0].mxu0 %v812
      %v908 = vpop.f32.mrb[0].mxu0
      %v909 = vadd.f32 0.0, %v908
      %v910 = vpop.f32.mrb[0].mxu0
      %v911 = vpop.f32.mrb[0].mxu0
      %v912 = vadd.f32 0.0, %v911
      %v913 = vpop.f32.mrb[0].mxu0
      %914 = vmatprep.mubr.bf16.mxu0 0
      %915 = vmatmul.mubr.bf16.gmra.mrb[0].mxu0 %v815
      %v916 = vpop.f32.mrb[0].mxu0
      %v917 = vadd.f32 0.0, %v916
      %v918 = vpop.f32.mrb[0].mxu0
      %v919 = vpop.f32.mrb[0].mxu0
      %v920 = vadd.f32 0.0, %v919
      %v921 = vpop.f32.mrb[0].mxu0
      %922 = vmatprep.mubr.bf16.mxu0 0
      %923 = vmatmul.mubr.bf16.gmra.mrb[0].mxu0 %v818
      %v924 = vpop.f32.mrb[0].mxu0
      %v925 = vadd.f32 0.0, %v924
      %v926 = vpop.f32.mrb[0].mxu0
      %v927 = vpop.f32.mrb[0].mxu0
      %v928 = vadd.f32 0.0, %v927
      %v929 = vpop.f32.mrb[0].mxu0
      %930 = vmatprep.mubr.bf16.mxu0 0
      %931 = vmatmul.mubr.bf16.gmra.mrb[0].mxu0 %v821
      %v932 = vpop.f32.mrb[0].mxu0
      %v933 = vadd.f32 0.0, %v932
      %v934 = vpop.f32.mrb[0].mxu0
      %v935 = vpop.f32.mrb[0].mxu0
      %v936 = vadd.f32 0.0, %v935
      %v937 = vpop.f32.mrb[0].mxu0
      %938 = vmatprep.mubr.bf16.mxu0 0
      %939 = vmatmul.mubr.bf16.gmra.mrb[0].mxu0 %v824
      %v940 = vpop.f32.mrb[0].mxu0
      %v941 = vadd.f32 0.0, %v940
      %v942 = vpop.f32.mrb[0].mxu0
      %v943 = vpop.f32.mrb[0].mxu0
      %v944 = vadd.f32 0.0, %v943
      %v945 = vpop.f32.mrb[0].mxu0
      %946 = vmatprep.mubr.bf16.mxu0 0
      %947 = vmatmul.mubr.bf16.gmra.mrb[0].mxu0 %v827
      %v948 = vpop.f32.mrb[0].mxu0
      %v949 = vadd.f32 0.0, %v948
      %v950 = vpop.f32.mrb[0].mxu0
      %v951 = vpop.f32.mrb[0].mxu0
      %v952 = vadd.f32 0.0, %v951
      %v953 = vpop.f32.mrb[0].mxu0
      %954 = vmatprep.mubr.bf16.mxu0 0
      %955 = vmatmul.mubr.bf16.gmra.mrb[0].mxu0 %v830
      %v956 = vpop.f32.mrb[0].mxu0
      %v957 = vadd.f32 0.0, %v956
      %v958 = vpop.f32.mrb[0].mxu0
      %v959 = vpop.f32.mrb[0].mxu0
      %v960 = vadd.f32 0.0, %v959
      %v961 = vpop.f32.mrb[0].mxu0
      %962 = vmatprep.mubr.bf16.mxu0 0
      %963 = vmatmul.mubr.bf16.gmra.mrb[0].mxu0 %v833
      %v964 = vpop.f32.mrb[0].mxu0
      %v965 = vadd.f32 0.0, %v964
      %v966 = vpop.f32.mrb[0].mxu0
      %v967 = vpop.f32.mrb[0].mxu0
      %v968 = vadd.f32 0.0, %v967
      %v969 = vpop.f32.mrb[0].mxu0
      %970 = vmatprep.mubr.bf16.mxu0 0
      %971 = vmatmul.mubr.bf16.gmra.mrb[0].mxu0 %v836
      %v972 = vpop.f32.mrb[0].mxu0
      %v973 = vadd.f32 0.0, %v972
      %v974 = vpop.f32.mrb[0].mxu0
      %v975 = vpop.f32.mrb[0].mxu0
      %v976 = vadd.f32 0.0, %v975
      %v977 = vpop.f32.mrb[0].mxu0
      %978 = vmatprep.mubr.bf16.mxu0 0
      %979 = vmatmul.mubr.bf16.gmra.mrb[0].mxu0 %v839
      %v980 = vpop.f32.mrb[0].mxu0
      %v981 = vadd.f32 0.0, %v980
      %v982 = vpop.f32.mrb[0].mxu0
      %v983 = vpop.f32.mrb[0].mxu0
      %v984 = vadd.f32 0.0, %v983
      %v985 = vpop.f32.mrb[0].mxu0
      %986 = vmatprep.mubr.bf16.mxu0 0
      %987 = vmatmul.mubr.bf16.gmra.mrb[0].mxu0 %v842
      %v988 = vpop.f32.mrb[0].mxu0
      %v989 = vadd.f32 0.0, %v988
      %v990 = vpop.f32.mrb[0].mxu0
      %v991 = vpop.f32.mrb[0].mxu0
      %v992 = vadd.f32 0.0, %v991
      %v993 = vpop.f32.mrb[0].mxu0
      %994 = vmatprep.mubr.bf16.mxu0 0
      %995 = vmatmul.mubr.bf16.gmra.mrb[0].mxu0 %v845
      %v996 = vpop.f32.mrb[0].mxu0
      %v997 = vadd.f32 0.0, %v996
      %v998 = vpop.f32.mrb[0].mxu0
      %v999 = vpop.f32.mrb[0].mxu0
      %v1000 = vadd.f32 0.0, %v999
      %v1001 = vpop.f32.mrb[0].mxu0
      %1002 = vmatprep.mubr.bf16.mxu0 0
      %1003 = vmatmul.mubr.bf16.gmra.mrb[0].mxu0 %v848
      %v1004 = vpop.f32.mrb[0].mxu0
      %v1005 = vadd.f32 0.0, %v1004
      %v1006 = vpop.f32.mrb[0].mxu0
      %v1007 = vpop.f32.mrb[0].mxu0
      %v1008 = vadd.f32 0.0, %v1007
      %v1009 = vpop.f32.mrb[0].mxu0
      %1010 = vdwg.mxu0
      %v1011 = vpack.c.bf16 %v888, %v885
      %v1012 = vpack.c.bf16 %v896, %v893
      %v1013 = vpack.c.bf16 %v904, %v901
      %v1014 = vpack.c.bf16 %v912, %v909
      %v1015 = vpack.c.bf16 %v920, %v917
      %v1016 = vpack.c.bf16 %v928, %v925
      %v1017 = vpack.c.bf16 %v936, %v933
      %v1018 = vpack.c.bf16 %v944, %v941
      %v1019 = vpack.c.bf16 %v952, %v949
      %v1020 = vpack.c.bf16 %v960, %v957
      %v1021 = vpack.c.bf16 %v968, %v965
      %v1022 = vpack.c.bf16 %v976, %v973
      %v1023 = vpack.c.bf16 %v984, %v981
      %v1024 = vpack.c.bf16 %v992, %v989
      %v1025 = vpack.c.bf16 %v1000, %v997
      %v1026 = vpack.c.bf16 %v1008, %v1005
      %v1027 = vld [vmem:[%s3] sm:$0xf]
      %v1028 = vld [vmem:[%s3 + $0x4] sm:$0xf]
      %v1029 = vld [vmem:[%s3 + $0x8] sm:$0xf]
      %v1030 = vld [vmem:[%s3 + $0xc] sm:$0xf]
      %v1031 = vld [vmem:[%s4] sm:$0x1]
      %v1033 = vlaneseq
      %v1034 = vshrl.u32 %v1033, 7
      %v1035 = vsub.s32 0, %v1034
      %v1036 = vrot.slane %v1031, %v1035
      %v1042 = vunpack.c.l.b16 %v1027
      %v1043 = vunpack.c.l.b16 %v1028
      %v1044 = vunpack.c.l.b16 %v1029
      %v1045 = vunpack.c.l.b16 %v1030
      %v1046 = vpack.c.b16 %v1043, %v1042
      %v1047 = vpack.c.b16 %v1045, %v1044
      %vm1050 = vcmask 261120
      %v1052 = vsel %vm1050, %v1011, 0
      %v1055 = vsel %vm1050, %v1012, 0
      %v1058 = vsel %vm1050, %v1013, 0
      %v1061 = vsel %vm1050, %v1014, 0
      %v1064 = vsel %vm1050, %v1015, 0
      %v1067 = vsel %vm1050, %v1016, 0
      %v1070 = vsel %vm1050, %v1017, 0
      %v1073 = vsel %vm1050, %v1018, 0
      %v1076 = vsel %vm1050, %v1019, 0
      %v1079 = vsel %vm1050, %v1020, 0
      %v1082 = vsel %vm1050, %v1021, 0
      %v1085 = vsel %vm1050, %v1022, 0
      %v1088 = vsel %vm1050, %v1023, 0
      %v1091 = vsel %vm1050, %v1024, 0
      %v1094 = vsel %vm1050, %v1025, 0
      %v1097 = vsel %vm1050, %v1026, 0
      %1099 = vmatprep.subr.bf16.mxu0 0
      %1100 = vmatpush1.bf16.msra.mxu0 %v1046
      %1101 = vmatprep.subr.bf16.mxu0 0
      %1102 = vmatpush1.bf16.msra.mxu0 %v1047
      %1103 = vmatprep.subr.bf16.mxu0 0
      %1104 = vmatpush1.bf16.msra.mxu0 0
      %1105 = vmatprep.subr.bf16.mxu0 0
      %1106 = vmatpush1.bf16.msra.mxu0 0
      %1107 = vmatprep.subr.bf16.mxu0 0
      %1108 = vmatpush1.bf16.msra.mxu0 0
      %1109 = vmatprep.subr.bf16.mxu0 0
      %1110 = vmatpush1.bf16.msra.mxu0 0
      %1111 = vmatprep.subr.bf16.mxu0 0
      %1112 = vmatpush1.bf16.msra.mxu0 0
      %1113 = vmatprep.subr.bf16.mxu0 0
      %1114 = vmatpush1.bf16.msra.mxu0 0
      %1115 = vmatprep.subr.bf16.mxu0 0
      %1116 = vmatpush1.bf16.msra.mxu0 0
      %1117 = vmatprep.subr.bf16.mxu0 0
      %1118 = vmatpush1.bf16.msra.mxu0 0
      %1119 = vmatprep.subr.bf16.mxu0 0
      %1120 = vmatpush1.bf16.msra.mxu0 0
      %1121 = vmatprep.subr.bf16.mxu0 0
      %1122 = vmatpush1.bf16.msra.mxu0 0
      %1123 = vmatprep.subr.bf16.mxu0 0
      %1124 = vmatpush1.bf16.msra.mxu0 0
      %1125 = vmatprep.subr.bf16.mxu0 0
      %1126 = vmatpush1.bf16.msra.mxu0 0
      %1127 = vmatprep.subr.bf16.mxu0 0
      %1128 = vmatpush1.bf16.msra.mxu0 0
      %1129 = vmatprep.subr.bf16.mxu0 0
      %1130 = vmatpush1.bf16.msra.mxu0 0
      %1131 = vmatprep.mubr.bf16.mxu0 0
      %1132 = vmatmul.mubr.bf16.gmra.mrb[0].mxu0 %v1052
      %v1133 = vpop.f32.mrb[0].mxu0
      %v1134 = vadd.f32 %v1036, %v1133
      %v1135 = vpop.f32.mrb[0].mxu0
      %v1136 = vpop.f32.mrb[0].mxu0
      %v1137 = vadd.f32 %v1036, %v1136
      %v1138 = vpop.f32.mrb[0].mxu0
      %1139 = vmatprep.mubr.bf16.mxu0 0
      %1140 = vmatmul.mubr.bf16.gmra.mrb[0].mxu0 %v1055
      %v1141 = vpop.f32.mrb[0].mxu0
      %v1142 = vadd.f32 %v1036, %v1141
      %v1143 = vpop.f32.mrb[0].mxu0
      %v1144 = vpop.f32.mrb[0].mxu0
      %v1145 = vadd.f32 %v1036, %v1144
      %v1146 = vpop.f32.mrb[0].mxu0
      %1147 = vmatprep.mubr.bf16.mxu0 0
      %1148 = vmatmul.mubr.bf16.gmra.mrb[0].mxu0 %v1058
      %v1149 = vpop.f32.mrb[0].mxu0
      %v1150 = vadd.f32 %v1036, %v1149
      %v1151 = vpop.f32.mrb[0].mxu0
      %v1152 = vpop.f32.mrb[0].mxu0
      %v1153 = vadd.f32 %v1036, %v1152
      %v1154 = vpop.f32.mrb[0].mxu0
      %1155 = vmatprep.mubr.bf16.mxu0 0
      %1156 = vmatmul.mubr.bf16.gmra.mrb[0].mxu0 %v1061
      %v1157 = vpop.f32.mrb[0].mxu0
      %v1158 = vadd.f32 %v1036, %v1157
      %v1159 = vpop.f32.mrb[0].mxu0
      %v1160 = vpop.f32.mrb[0].mxu0
      %v1161 = vadd.f32 %v1036, %v1160
      %v1162 = vpop.f32.mrb[0].mxu0
      %1163 = vmatprep.mubr.bf16.mxu0 0
      %1164 = vmatmul.mubr.bf16.gmra.mrb[0].mxu0 %v1064
      %v1165 = vpop.f32.mrb[0].mxu0
      %v1166 = vadd.f32 %v1036, %v1165
      %v1167 = vpop.f32.mrb[0].mxu0
      %v1168 = vpop.f32.mrb[0].mxu0
      %v1169 = vadd.f32 %v1036, %v1168
      %v1170 = vpop.f32.mrb[0].mxu0
      %1171 = vmatprep.mubr.bf16.mxu0 0
      %1172 = vmatmul.mubr.bf16.gmra.mrb[0].mxu0 %v1067
      %v1173 = vpop.f32.mrb[0].mxu0
      %v1174 = vadd.f32 %v1036, %v1173
      %v1175 = vpop.f32.mrb[0].mxu0
      %v1176 = vpop.f32.mrb[0].mxu0
      %v1177 = vadd.f32 %v1036, %v1176
      %v1178 = vpop.f32.mrb[0].mxu0
      %1179 = vmatprep.mubr.bf16.mxu0 0
      %1180 = vmatmul.mubr.bf16.gmra.mrb[0].mxu0 %v1070
      %v1181 = vpop.f32.mrb[0].mxu0
      %v1182 = vadd.f32 %v1036, %v1181
      %v1183 = vpop.f32.mrb[0].mxu0
      %v1184 = vpop.f32.mrb[0].mxu0
      %v1185 = vadd.f32 %v1036, %v1184
      %v1186 = vpop.f32.mrb[0].mxu0
      %1187 = vmatprep.mubr.bf16.mxu0 0
      %1188 = vmatmul.mubr.bf16.gmra.mrb[0].mxu0 %v1073
      %v1189 = vpop.f32.mrb[0].mxu0
      %v1190 = vadd.f32 %v1036, %v1189
      %v1191 = vpop.f32.mrb[0].mxu0
      %v1192 = vpop.f32.mrb[0].mxu0
      %v1193 = vadd.f32 %v1036, %v1192
      %v1194 = vpop.f32.mrb[0].mxu0
      %1195 = vmatprep.mubr.bf16.mxu0 0
      %1196 = vmatmul.mubr.bf16.gmra.mrb[0].mxu0 %v1076
      %v1197 = vpop.f32.mrb[0].mxu0
      %v1198 = vadd.f32 %v1036, %v1197
      %v1199 = vpop.f32.mrb[0].mxu0
      %v1200 = vpop.f32.mrb[0].mxu0
      %v1201 = vadd.f32 %v1036, %v1200
      %v1202 = vpop.f32.mrb[0].mxu0
      %1203 = vmatprep.mubr.bf16.mxu0 0
      %1204 = vmatmul.mubr.bf16.gmra.mrb[0].mxu0 %v1079
      %v1205 = vpop.f32.mrb[0].mxu0
      %v1206 = vadd.f32 %v1036, %v1205
      %v1207 = vpop.f32.mrb[0].mxu0
      %v1208 = vpop.f32.mrb[0].mxu0
      %v1209 = vadd.f32 %v1036, %v1208
      %v1210 = vpop.f32.mrb[0].mxu0
      %1211 = vmatprep.mubr.bf16.mxu0 0
      %1212 = vmatmul.mubr.bf16.gmra.mrb[0].mxu0 %v1082
      %v1213 = vpop.f32.mrb[0].mxu0
      %v1214 = vadd.f32 %v1036, %v1213
      %v1215 = vpop.f32.mrb[0].mxu0
      %v1216 = vpop.f32.mrb[0].mxu0
      %v1217 = vadd.f32 %v1036, %v1216
      %v1218 = vpop.f32.mrb[0].mxu0
      %1219 = vmatprep.mubr.bf16.mxu0 0
      %1220 = vmatmul.mubr.bf16.gmra.mrb[0].mxu0 %v1085
      %v1221 = vpop.f32.mrb[0].mxu0
      %v1222 = vadd.f32 %v1036, %v1221
      %v1223 = vpop.f32.mrb[0].mxu0
      %v1224 = vpop.f32.mrb[0].mxu0
      %v1225 = vadd.f32 %v1036, %v1224
      %v1226 = vpop.f32.mrb[0].mxu0
      %1227 = vmatprep.mubr.bf16.mxu0 0
      %1228 = vmatmul.mubr.bf16.gmra.mrb[0].mxu0 %v1088
      %v1229 = vpop.f32.mrb[0].mxu0
      %v1230 = vadd.f32 %v1036, %v1229
      %v1231 = vpop.f32.mrb[0].mxu0
      %v1232 = vpop.f32.mrb[0].mxu0
      %v1233 = vadd.f32 %v1036, %v1232
      %v1234 = vpop.f32.mrb[0].mxu0
      %1235 = vmatprep.mubr.bf16.mxu0 0
      %1236 = vmatmul.mubr.bf16.gmra.mrb[0].mxu0 %v1091
      %v1237 = vpop.f32.mrb[0].mxu0
      %v1238 = vadd.f32 %v1036, %v1237
      %v1239 = vpop.f32.mrb[0].mxu0
      %v1240 = vpop.f32.mrb[0].mxu0
      %v1241 = vadd.f32 %v1036, %v1240
      %v1242 = vpop.f32.mrb[0].mxu0
      %1243 = vmatprep.mubr.bf16.mxu0 0
      %1244 = vmatmul.mubr.bf16.gmra.mrb[0].mxu0 %v1094
      %v1245 = vpop.f32.mrb[0].mxu0
      %v1246 = vadd.f32 %v1036, %v1245
      %v1247 = vpop.f32.mrb[0].mxu0
      %v1248 = vpop.f32.mrb[0].mxu0
      %v1249 = vadd.f32 %v1036, %v1248
      %v1250 = vpop.f32.mrb[0].mxu0
      %1251 = vmatprep.mubr.bf16.mxu0 0
      %1252 = vmatmul.mubr.bf16.gmra.mrb[0].mxu0 %v1097
      %v1253 = vpop.f32.mrb[0].mxu0
      %v1254 = vadd.f32 %v1036, %v1253
      %v1255 = vpop.f32.mrb[0].mxu0
      %v1256 = vpop.f32.mrb[0].mxu0
      %v1257 = vadd.f32 %v1036, %v1256
      %v1258 = vpop.f32.mrb[0].mxu0
      %1259 = vdwg.mxu0
      %vm1260 = vcmp.gt.f32.partialorder %v1134, 0.0
      %vm1261 = vcmp.gt.f32.partialorder %v1137, 0.0
      %vm1262 = vcmp.gt.f32.partialorder %v1142, 0.0
      %vm1263 = vcmp.gt.f32.partialorder %v1145, 0.0
      %vm1264 = vcmp.gt.f32.partialorder %v1150, 0.0
      %vm1265 = vcmp.gt.f32.partialorder %v1153, 0.0
      %vm1266 = vcmp.gt.f32.partialorder %v1158, 0.0
      %vm1267 = vcmp.gt.f32.partialorder %v1161, 0.0
      %vm1268 = vcmp.gt.f32.partialorder %v1166, 0.0
      %vm1269 = vcmp.gt.f32.partialorder %v1169, 0.0
      %vm1270 = vcmp.gt.f32.partialorder %v1174, 0.0
      %vm1271 = vcmp.gt.f32.partialorder %v1177, 0.0
      %vm1272 = vcmp.gt.f32.partialorder %v1182, 0.0
      %vm1273 = vcmp.gt.f32.partialorder %v1185, 0.0
      %vm1274 = vcmp.gt.f32.partialorder %v1190, 0.0
      %vm1275 = vcmp.gt.f32.partialorder %v1193, 0.0
      %vm1276 = vcmp.gt.f32.partialorder %v1198, 0.0
      %vm1277 = vcmp.gt.f32.partialorder %v1201, 0.0
      %vm1278 = vcmp.gt.f32.partialorder %v1206, 0.0
      %vm1279 = vcmp.gt.f32.partialorder %v1209, 0.0
      %vm1280 = vcmp.gt.f32.partialorder %v1214, 0.0
      %vm1281 = vcmp.gt.f32.partialorder %v1217, 0.0
      %vm1282 = vcmp.gt.f32.partialorder %v1222, 0.0
      %vm1283 = vcmp.gt.f32.partialorder %v1225, 0.0
      %vm1284 = vcmp.gt.f32.partialorder %v1230, 0.0
      %vm1285 = vcmp.gt.f32.partialorder %v1233, 0.0
      %vm1286 = vcmp.gt.f32.partialorder %v1238, 0.0
      %vm1287 = vcmp.gt.f32.partialorder %v1241, 0.0
      %vm1288 = vcmp.gt.f32.partialorder %v1246, 0.0
      %vm1289 = vcmp.gt.f32.partialorder %v1249, 0.0
      %vm1290 = vcmp.gt.f32.partialorder %v1254, 0.0
      %vm1291 = vcmp.gt.f32.partialorder %v1257, 0.0
      %v1292 = vmul.f32 %v1134, 0.01
      %v1293 = vmul.f32 %v1137, 0.01
      %v1294 = vmul.f32 %v1142, 0.01
      %v1295 = vmul.f32 %v1145, 0.01
      %v1296 = vmul.f32 %v1150, 0.01
      %v1297 = vmul.f32 %v1153, 0.01
      %v1298 = vmul.f32 %v1158, 0.01
      %v1299 = vmul.f32 %v1161, 0.01
      %v1300 = vmul.f32 %v1166, 0.01
      %v1301 = vmul.f32 %v1169, 0.01
      %v1302 = vmul.f32 %v1174, 0.01
      %v1303 = vmul.f32 %v1177, 0.01
      %v1304 = vmul.f32 %v1182, 0.01
      %v1305 = vmul.f32 %v1185, 0.01
      %v1306 = vmul.f32 %v1190, 0.01
      %v1307 = vmul.f32 %v1193, 0.01
      %v1308 = vmul.f32 %v1198, 0.01
      %v1309 = vmul.f32 %v1201, 0.01
      %v1310 = vmul.f32 %v1206, 0.01
      %v1311 = vmul.f32 %v1209, 0.01
      %v1312 = vmul.f32 %v1214, 0.01
      %v1313 = vmul.f32 %v1217, 0.01
      %v1314 = vmul.f32 %v1222, 0.01
      %v1315 = vmul.f32 %v1225, 0.01
      %v1316 = vmul.f32 %v1230, 0.01
      %v1317 = vmul.f32 %v1233, 0.01
      %v1318 = vmul.f32 %v1238, 0.01
      %v1319 = vmul.f32 %v1241, 0.01
      %v1320 = vmul.f32 %v1246, 0.01
      %v1321 = vmul.f32 %v1249, 0.01
      %v1322 = vmul.f32 %v1254, 0.01
      %v1323 = vmul.f32 %v1257, 0.01
      %v1324 = vsel %vm1260, %v1134, %v1292
      %v1325 = vsel %vm1261, %v1137, %v1293
      %v1326 = vsel %vm1262, %v1142, %v1294
      %v1327 = vsel %vm1263, %v1145, %v1295
      %v1328 = vsel %vm1264, %v1150, %v1296
      %v1329 = vsel %vm1265, %v1153, %v1297
      %v1330 = vsel %vm1266, %v1158, %v1298
      %v1331 = vsel %vm1267, %v1161, %v1299
      %v1332 = vsel %vm1268, %v1166, %v1300
      %v1333 = vsel %vm1269, %v1169, %v1301
      %v1334 = vsel %vm1270, %v1174, %v1302
      %v1335 = vsel %vm1271, %v1177, %v1303
      %v1336 = vsel %vm1272, %v1182, %v1304
      %v1337 = vsel %vm1273, %v1185, %v1305
      %v1338 = vsel %vm1274, %v1190, %v1306
      %v1339 = vsel %vm1275, %v1193, %v1307
      %v1340 = vsel %vm1276, %v1198, %v1308
      %v1341 = vsel %vm1277, %v1201, %v1309
      %v1342 = vsel %vm1278, %v1206, %v1310
      %v1343 = vsel %vm1279, %v1209, %v1311
      %v1344 = vsel %vm1280, %v1214, %v1312
      %v1345 = vsel %vm1281, %v1217, %v1313
      %v1346 = vsel %vm1282, %v1222, %v1314
      %v1347 = vsel %vm1283, %v1225, %v1315
      %v1348 = vsel %vm1284, %v1230, %v1316
      %v1349 = vsel %vm1285, %v1233, %v1317
      %v1350 = vsel %vm1286, %v1238, %v1318
      %v1351 = vsel %vm1287, %v1241, %v1319
      %v1352 = vsel %vm1288, %v1246, %v1320
      %v1353 = vsel %vm1289, %v1249, %v1321
      %v1354 = vsel %vm1290, %v1254, %v1322
      %v1355 = vsel %vm1291, %v1257, %v1323
      %v1356 = vpack.c.bf16 %v1325, %v1324
      %v1357 = vpack.c.bf16 %v1327, %v1326
      %v1358 = vpack.c.bf16 %v1329, %v1328
      %v1359 = vpack.c.bf16 %v1331, %v1330
      %v1360 = vpack.c.bf16 %v1333, %v1332
      %v1361 = vpack.c.bf16 %v1335, %v1334
      %v1362 = vpack.c.bf16 %v1337, %v1336
      %v1363 = vpack.c.bf16 %v1339, %v1338
      %v1364 = vpack.c.bf16 %v1341, %v1340
      %v1365 = vpack.c.bf16 %v1343, %v1342
      %v1366 = vpack.c.bf16 %v1345, %v1344
      %v1367 = vpack.c.bf16 %v1347, %v1346
      %v1368 = vpack.c.bf16 %v1349, %v1348
      %v1369 = vpack.c.bf16 %v1351, %v1350
      %v1370 = vpack.c.bf16 %v1353, %v1352
      %v1371 = vpack.c.bf16 %v1355, %v1354
      %v1372 = vld [vmem:[%s5] sm:$0xf]
      %v1373 = vld [vmem:[%s5 + $0x4] sm:$0xf]
      %v1374 = vld [vmem:[%s5 + $0x8] sm:$0xf]
      %v1375 = vld [vmem:[%s5 + $0xc] sm:$0xf]
      %v1376 = vld [vmem:[%s6] sm:$0x1]
      %v1378 = vlaneseq
      %v1379 = vshrl.u32 %v1378, 7
      %v1380 = vsub.s32 0, %v1379
      %v1381 = vrot.slane %v1376, %v1380
      %v1387 = vunpack.c.l.b16 %v1372
      %v1388 = vunpack.c.l.b16 %v1373
      %v1389 = vunpack.c.l.b16 %v1374
      %v1390 = vunpack.c.l.b16 %v1375
      %v1391 = vpack.c.b16 %v1388, %v1387
      %v1392 = vpack.c.b16 %v1390, %v1389
      %v1396 = vsel %vm1050, %v1356, 0
      %v1399 = vsel %vm1050, %v1357, 0
      %v1402 = vsel %vm1050, %v1358, 0
      %v1405 = vsel %vm1050, %v1359, 0
      %v1408 = vsel %vm1050, %v1360, 0
      %v1411 = vsel %vm1050, %v1361, 0
      %v1414 = vsel %vm1050, %v1362, 0
      %v1417 = vsel %vm1050, %v1363, 0
      %v1420 = vsel %vm1050, %v1364, 0
      %v1423 = vsel %vm1050, %v1365, 0
      %v1426 = vsel %vm1050, %v1366, 0
      %v1429 = vsel %vm1050, %v1367, 0
      %v1432 = vsel %vm1050, %v1368, 0
      %v1435 = vsel %vm1050, %v1369, 0
      %v1438 = vsel %vm1050, %v1370, 0
      %v1441 = vsel %vm1050, %v1371, 0
      %1443 = vmatprep.subr.bf16.mxu0 0
      %1444 = vmatpush1.bf16.msra.mxu0 %v1391
      %1445 = vmatprep.subr.bf16.mxu0 0
      %1446 = vmatpush1.bf16.msra.mxu0 %v1392
      %1447 = vmatprep.subr.bf16.mxu0 0
      %1448 = vmatpush1.bf16.msra.mxu0 0
      %1449 = vmatprep.subr.bf16.mxu0 0
      %1450 = vmatpush1.bf16.msra.mxu0 0
      %1451 = vmatprep.subr.bf16.mxu0 0
      %1452 = vmatpush1.bf16.msra.mxu0 0
      %1453 = vmatprep.subr.bf16.mxu0 0
      %1454 = vmatpush1.bf16.msra.mxu0 0
      %1455 = vmatprep.subr.bf16.mxu0 0
      %1456 = vmatpush1.bf16.msra.mxu0 0
      %1457 = vmatprep.subr.bf16.mxu0 0
      %1458 = vmatpush1.bf16.msra.mxu0 0
      %1459 = vmatprep.subr.bf16.mxu0 0
      %1460 = vmatpush1.bf16.msra.mxu0 0
      %1461 = vmatprep.subr.bf16.mxu0 0
      %1462 = vmatpush1.bf16.msra.mxu0 0
      %1463 = vmatprep.subr.bf16.mxu0 0
      %1464 = vmatpush1.bf16.msra.mxu0 0
      %1465 = vmatprep.subr.bf16.mxu0 0
      %1466 = vmatpush1.bf16.msra.mxu0 0
      %1467 = vmatprep.subr.bf16.mxu0 0
      %1468 = vmatpush1.bf16.msra.mxu0 0
      %1469 = vmatprep.subr.bf16.mxu0 0
      %1470 = vmatpush1.bf16.msra.mxu0 0
      %1471 = vmatprep.subr.bf16.mxu0 0
      %1472 = vmatpush1.bf16.msra.mxu0 0
      %1473 = vmatprep.subr.bf16.mxu0 0
      %1474 = vmatpush1.bf16.msra.mxu0 0
      %1475 = vmatprep.mubr.bf16.mxu0 0
      %1476 = vmatmul.mubr.bf16.gmra.mrb[0].mxu0 %v1396
      %v1477 = vpop.f32.mrb[0].mxu0
      %v1478 = vadd.f32 %v1381, %v1477
      %v1479 = vpop.f32.mrb[0].mxu0
      %v1480 = vpop.f32.mrb[0].mxu0
      %v1481 = vadd.f32 %v1381, %v1480
      %v1482 = vpop.f32.mrb[0].mxu0
      %1483 = vmatprep.mubr.bf16.mxu0 0
      %1484 = vmatmul.mubr.bf16.gmra.mrb[0].mxu0 %v1399
      %v1485 = vpop.f32.mrb[0].mxu0
      %v1486 = vadd.f32 %v1381, %v1485
      %v1487 = vpop.f32.mrb[0].mxu0
      %v1488 = vpop.f32.mrb[0].mxu0
      %v1489 = vadd.f32 %v1381, %v1488
      %v1490 = vpop.f32.mrb[0].mxu0
      %1491 = vmatprep.mubr.bf16.mxu0 0
      %1492 = vmatmul.mubr.bf16.gmra.mrb[0].mxu0 %v1402
      %v1493 = vpop.f32.mrb[0].mxu0
      %v1494 = vadd.f32 %v1381, %v1493
      %v1495 = vpop.f32.mrb[0].mxu0
      %v1496 = vpop.f32.mrb[0].mxu0
      %v1497 = vadd.f32 %v1381, %v1496
      %v1498 = vpop.f32.mrb[0].mxu0
      %1499 = vmatprep.mubr.bf16.mxu0 0
      %1500 = vmatmul.mubr.bf16.gmra.mrb[0].mxu0 %v1405
      %v1501 = vpop.f32.mrb[0].mxu0
      %v1502 = vadd.f32 %v1381, %v1501
      %v1503 = vpop.f32.mrb[0].mxu0
      %v1504 = vpop.f32.mrb[0].mxu0
      %v1505 = vadd.f32 %v1381, %v1504
      %v1506 = vpop.f32.mrb[0].mxu0
      %1507 = vmatprep.mubr.bf16.mxu0 0
      %1508 = vmatmul.mubr.bf16.gmra.mrb[0].mxu0 %v1408
      %v1509 = vpop.f32.mrb[0].mxu0
      %v1510 = vadd.f32 %v1381, %v1509
      %v1511 = vpop.f32.mrb[0].mxu0
      %v1512 = vpop.f32.mrb[0].mxu0
      %v1513 = vadd.f32 %v1381, %v1512
      %v1514 = vpop.f32.mrb[0].mxu0
      %1515 = vmatprep.mubr.bf16.mxu0 0
      %1516 = vmatmul.mubr.bf16.gmra.mrb[0].mxu0 %v1411
      %v1517 = vpop.f32.mrb[0].mxu0
      %v1518 = vadd.f32 %v1381, %v1517
      %v1519 = vpop.f32.mrb[0].mxu0
      %v1520 = vpop.f32.mrb[0].mxu0
      %v1521 = vadd.f32 %v1381, %v1520
      %v1522 = vpop.f32.mrb[0].mxu0
      %1523 = vmatprep.mubr.bf16.mxu0 0
      %1524 = vmatmul.mubr.bf16.gmra.mrb[0].mxu0 %v1414
      %v1525 = vpop.f32.mrb[0].mxu0
      %v1526 = vadd.f32 %v1381, %v1525
      %v1527 = vpop.f32.mrb[0].mxu0
      %v1528 = vpop.f32.mrb[0].mxu0
      %v1529 = vadd.f32 %v1381, %v1528
      %v1530 = vpop.f32.mrb[0].mxu0
      %1531 = vmatprep.mubr.bf16.mxu0 0
      %1532 = vmatmul.mubr.bf16.gmra.mrb[0].mxu0 %v1417
      %v1533 = vpop.f32.mrb[0].mxu0
      %v1534 = vadd.f32 %v1381, %v1533
      %v1535 = vpop.f32.mrb[0].mxu0
      %v1536 = vpop.f32.mrb[0].mxu0
      %v1537 = vadd.f32 %v1381, %v1536
      %v1538 = vpop.f32.mrb[0].mxu0
      %1539 = vmatprep.mubr.bf16.mxu0 0
      %1540 = vmatmul.mubr.bf16.gmra.mrb[0].mxu0 %v1420
      %v1541 = vpop.f32.mrb[0].mxu0
      %v1542 = vadd.f32 %v1381, %v1541
      %v1543 = vpop.f32.mrb[0].mxu0
      %v1544 = vpop.f32.mrb[0].mxu0
      %v1545 = vadd.f32 %v1381, %v1544
      %v1546 = vpop.f32.mrb[0].mxu0
      %1547 = vmatprep.mubr.bf16.mxu0 0
      %1548 = vmatmul.mubr.bf16.gmra.mrb[0].mxu0 %v1423
      %v1549 = vpop.f32.mrb[0].mxu0
      %v1550 = vadd.f32 %v1381, %v1549
      %v1551 = vpop.f32.mrb[0].mxu0
      %v1552 = vpop.f32.mrb[0].mxu0
      %v1553 = vadd.f32 %v1381, %v1552
      %v1554 = vpop.f32.mrb[0].mxu0
      %1555 = vmatprep.mubr.bf16.mxu0 0
      %1556 = vmatmul.mubr.bf16.gmra.mrb[0].mxu0 %v1426
      %v1557 = vpop.f32.mrb[0].mxu0
      %v1558 = vadd.f32 %v1381, %v1557
      %v1559 = vpop.f32.mrb[0].mxu0
      %v1560 = vpop.f32.mrb[0].mxu0
      %v1561 = vadd.f32 %v1381, %v1560
      %v1562 = vpop.f32.mrb[0].mxu0
      %1563 = vmatprep.mubr.bf16.mxu0 0
      %1564 = vmatmul.mubr.bf16.gmra.mrb[0].mxu0 %v1429
      %v1565 = vpop.f32.mrb[0].mxu0
      %v1566 = vadd.f32 %v1381, %v1565
      %v1567 = vpop.f32.mrb[0].mxu0
      %v1568 = vpop.f32.mrb[0].mxu0
      %v1569 = vadd.f32 %v1381, %v1568
      %v1570 = vpop.f32.mrb[0].mxu0
      %1571 = vmatprep.mubr.bf16.mxu0 0
      %1572 = vmatmul.mubr.bf16.gmra.mrb[0].mxu0 %v1432
      %v1573 = vpop.f32.mrb[0].mxu0
      %v1574 = vadd.f32 %v1381, %v1573
      %v1575 = vpop.f32.mrb[0].mxu0
      %v1576 = vpop.f32.mrb[0].mxu0
      %v1577 = vadd.f32 %v1381, %v1576
      %v1578 = vpop.f32.mrb[0].mxu0
      %1579 = vmatprep.mubr.bf16.mxu0 0
      %1580 = vmatmul.mubr.bf16.gmra.mrb[0].mxu0 %v1435
      %v1581 = vpop.f32.mrb[0].mxu0
      %v1582 = vadd.f32 %v1381, %v1581
      %v1583 = vpop.f32.mrb[0].mxu0
      %v1584 = vpop.f32.mrb[0].mxu0
      %v1585 = vadd.f32 %v1381, %v1584
      %v1586 = vpop.f32.mrb[0].mxu0
      %1587 = vmatprep.mubr.bf16.mxu0 0
      %1588 = vmatmul.mubr.bf16.gmra.mrb[0].mxu0 %v1438
      %v1589 = vpop.f32.mrb[0].mxu0
      %v1590 = vadd.f32 %v1381, %v1589
      %v1591 = vpop.f32.mrb[0].mxu0
      %v1592 = vpop.f32.mrb[0].mxu0
      %v1593 = vadd.f32 %v1381, %v1592
      %v1594 = vpop.f32.mrb[0].mxu0
      %1595 = vmatprep.mubr.bf16.mxu0 0
      %1596 = vmatmul.mubr.bf16.gmra.mrb[0].mxu0 %v1441
      %v1597 = vpop.f32.mrb[0].mxu0
      %v1598 = vadd.f32 %v1381, %v1597
      %v1599 = vpop.f32.mrb[0].mxu0
      %v1600 = vpop.f32.mrb[0].mxu0
      %v1601 = vadd.f32 %v1381, %v1600
      %v1602 = vpop.f32.mrb[0].mxu0
      %1603 = vdwg.mxu0
      %vm1604 = vcmp.gt.f32.partialorder %v1478, 0.0
      %vm1605 = vcmp.gt.f32.partialorder %v1481, 0.0
      %vm1606 = vcmp.gt.f32.partialorder %v1486, 0.0
      %vm1607 = vcmp.gt.f32.partialorder %v1489, 0.0
      %vm1608 = vcmp.gt.f32.partialorder %v1494, 0.0
      %vm1609 = vcmp.gt.f32.partialorder %v1497, 0.0
      %vm1610 = vcmp.gt.f32.partialorder %v1502, 0.0
      %vm1611 = vcmp.gt.f32.partialorder %v1505, 0.0
      %vm1612 = vcmp.gt.f32.partialorder %v1510, 0.0
      %vm1613 = vcmp.gt.f32.partialorder %v1513, 0.0
      %vm1614 = vcmp.gt.f32.partialorder %v1518, 0.0
      %vm1615 = vcmp.gt.f32.partialorder %v1521, 0.0
      %vm1616 = vcmp.gt.f32.partialorder %v1526, 0.0
      %vm1617 = vcmp.gt.f32.partialorder %v1529, 0.0
      %vm1618 = vcmp.gt.f32.partialorder %v1534, 0.0
      %vm1619 = vcmp.gt.f32.partialorder %v1537, 0.0
      %vm1620 = vcmp.gt.f32.partialorder %v1542, 0.0
      %vm1621 = vcmp.gt.f32.partialorder %v1545, 0.0
      %vm1622 = vcmp.gt.f32.partialorder %v1550, 0.0
      %vm1623 = vcmp.gt.f32.partialorder %v1553, 0.0
      %vm1624 = vcmp.gt.f32.partialorder %v1558, 0.0
      %vm1625 = vcmp.gt.f32.partialorder %v1561, 0.0
      %vm1626 = vcmp.gt.f32.partialorder %v1566, 0.0
      %vm1627 = vcmp.gt.f32.partialorder %v1569, 0.0
      %vm1628 = vcmp.gt.f32.partialorder %v1574, 0.0
      %vm1629 = vcmp.gt.f32.partialorder %v1577, 0.0
      %vm1630 = vcmp.gt.f32.partialorder %v1582, 0.0
      %vm1631 = vcmp.gt.f32.partialorder %v1585, 0.0
      %vm1632 = vcmp.gt.f32.partialorder %v1590, 0.0
      %vm1633 = vcmp.gt.f32.partialorder %v1593, 0.0
      %vm1634 = vcmp.gt.f32.partialorder %v1598, 0.0
      %vm1635 = vcmp.gt.f32.partialorder %v1601, 0.0
      %v1636 = vmul.f32 %v1478, 0.01
      %v1637 = vmul.f32 %v1481, 0.01
      %v1638 = vmul.f32 %v1486, 0.01
      %v1639 = vmul.f32 %v1489, 0.01
      %v1640 = vmul.f32 %v1494, 0.01
      %v1641 = vmul.f32 %v1497, 0.01
      %v1642 = vmul.f32 %v1502, 0.01
      %v1643 = vmul.f32 %v1505, 0.01
      %v1644 = vmul.f32 %v1510, 0.01
      %v1645 = vmul.f32 %v1513, 0.01
      %v1646 = vmul.f32 %v1518, 0.01
      %v1647 = vmul.f32 %v1521, 0.01
      %v1648 = vmul.f32 %v1526, 0.01
      %v1649 = vmul.f32 %v1529, 0.01
      %v1650 = vmul.f32 %v1534, 0.01
      %v1651 = vmul.f32 %v1537, 0.01
      %v1652 = vmul.f32 %v1542, 0.01
      %v1653 = vmul.f32 %v1545, 0.01
      %v1654 = vmul.f32 %v1550, 0.01
      %v1655 = vmul.f32 %v1553, 0.01
      %v1656 = vmul.f32 %v1558, 0.01
      %v1657 = vmul.f32 %v1561, 0.01
      %v1658 = vmul.f32 %v1566, 0.01
      %v1659 = vmul.f32 %v1569, 0.01
      %v1660 = vmul.f32 %v1574, 0.01
      %v1661 = vmul.f32 %v1577, 0.01
      %v1662 = vmul.f32 %v1582, 0.01
      %v1663 = vmul.f32 %v1585, 0.01
      %v1664 = vmul.f32 %v1590, 0.01
      %v1665 = vmul.f32 %v1593, 0.01
      %v1666 = vmul.f32 %v1598, 0.01
      %v1667 = vmul.f32 %v1601, 0.01
      %v1668 = vsel %vm1604, %v1478, %v1636
      %v1669 = vsel %vm1605, %v1481, %v1637
      %v1670 = vsel %vm1606, %v1486, %v1638
      %v1671 = vsel %vm1607, %v1489, %v1639
      %v1672 = vsel %vm1608, %v1494, %v1640
      %v1673 = vsel %vm1609, %v1497, %v1641
      %v1674 = vsel %vm1610, %v1502, %v1642
      %v1675 = vsel %vm1611, %v1505, %v1643
      %v1676 = vsel %vm1612, %v1510, %v1644
      %v1677 = vsel %vm1613, %v1513, %v1645
      %v1678 = vsel %vm1614, %v1518, %v1646
      %v1679 = vsel %vm1615, %v1521, %v1647
      %v1680 = vsel %vm1616, %v1526, %v1648
      %v1681 = vsel %vm1617, %v1529, %v1649
      %v1682 = vsel %vm1618, %v1534, %v1650
      %v1683 = vsel %vm1619, %v1537, %v1651
      %v1684 = vsel %vm1620, %v1542, %v1652
      %v1685 = vsel %vm1621, %v1545, %v1653
      %v1686 = vsel %vm1622, %v1550, %v1654
      %v1687 = vsel %vm1623, %v1553, %v1655
      %v1688 = vsel %vm1624, %v1558, %v1656
      %v1689 = vsel %vm1625, %v1561, %v1657
      %v1690 = vsel %vm1626, %v1566, %v1658
      %v1691 = vsel %vm1627, %v1569, %v1659
      %v1692 = vsel %vm1628, %v1574, %v1660
      %v1693 = vsel %vm1629, %v1577, %v1661
      %v1694 = vsel %vm1630, %v1582, %v1662
      %v1695 = vsel %vm1631, %v1585, %v1663
      %v1696 = vsel %vm1632, %v1590, %v1664
      %v1697 = vsel %vm1633, %v1593, %v1665
      %v1698 = vsel %vm1634, %v1598, %v1666
      %v1699 = vsel %vm1635, %v1601, %v1667
      %v1700 = vpack.c.bf16 %v1669, %v1668
      %v1701 = vpack.c.bf16 %v1671, %v1670
      %v1702 = vpack.c.bf16 %v1673, %v1672
      %v1703 = vpack.c.bf16 %v1675, %v1674
      %v1704 = vpack.c.bf16 %v1677, %v1676
      %v1705 = vpack.c.bf16 %v1679, %v1678
      %v1706 = vpack.c.bf16 %v1681, %v1680
      %v1707 = vpack.c.bf16 %v1683, %v1682
      %v1708 = vpack.c.bf16 %v1685, %v1684
      %v1709 = vpack.c.bf16 %v1687, %v1686
      %v1710 = vpack.c.bf16 %v1689, %v1688
      %v1711 = vpack.c.bf16 %v1691, %v1690
      %v1712 = vpack.c.bf16 %v1693, %v1692
      %v1713 = vpack.c.bf16 %v1695, %v1694
      %v1714 = vpack.c.bf16 %v1697, %v1696
      %v1715 = vpack.c.bf16 %v1699, %v1698
      %v1716 = vld [vmem:[%s7] sm:$0xf]
      %v1717 = vld [vmem:[%s7 + $0x4] sm:$0xf]
      %v1718 = vld [vmem:[%s7 + $0x8] sm:$0xf]
      %v1719 = vld [vmem:[%s7 + $0xc] sm:$0xf]
      %v1720 = vld [vmem:[%s8] sm:$0x1]
      %v1722 = vlaneseq
      %v1723 = vshrl.u32 %v1722, 7
      %v1724 = vsub.s32 0, %v1723
      %v1725 = vrot.slane %v1720, %v1724
      %v1731 = vunpack.c.l.b16 %v1716
      %v1732 = vunpack.c.l.b16 %v1717
      %v1733 = vunpack.c.l.b16 %v1718
      %v1734 = vunpack.c.l.b16 %v1719
      %v1735 = vpack.c.b16 %v1732, %v1731
      %v1736 = vpack.c.b16 %v1734, %v1733
      %v1740 = vsel %vm1050, %v1700, 0
      %v1743 = vsel %vm1050, %v1701, 0
      %v1746 = vsel %vm1050, %v1702, 0
      %v1749 = vsel %vm1050, %v1703, 0
      %v1752 = vsel %vm1050, %v1704, 0
      %v1755 = vsel %vm1050, %v1705, 0
      %v1758 = vsel %vm1050, %v1706, 0
      %v1761 = vsel %vm1050, %v1707, 0
      %v1764 = vsel %vm1050, %v1708, 0
      %v1767 = vsel %vm1050, %v1709, 0
      %v1770 = vsel %vm1050, %v1710, 0
      %v1773 = vsel %vm1050, %v1711, 0
      %v1776 = vsel %vm1050, %v1712, 0
      %v1779 = vsel %vm1050, %v1713, 0
      %v1782 = vsel %vm1050, %v1714, 0
      %v1785 = vsel %vm1050, %v1715, 0
      %1787 = vmatprep.subr.bf16.mxu0 0
      %1788 = vmatpush1.bf16.msra.mxu0 %v1735
      %1789 = vmatprep.subr.bf16.mxu0 0
      %1790 = vmatpush1.bf16.msra.mxu0 %v1736
      %1791 = vmatprep.subr.bf16.mxu0 0
      %1792 = vmatpush1.bf16.msra.mxu0 0
      %1793 = vmatprep.subr.bf16.mxu0 0
      %1794 = vmatpush1.bf16.msra.mxu0 0
      %1795 = vmatprep.subr.bf16.mxu0 0
      %1796 = vmatpush1.bf16.msra.mxu0 0
      %1797 = vmatprep.subr.bf16.mxu0 0
      %1798 = vmatpush1.bf16.msra.mxu0 0
      %1799 = vmatprep.subr.bf16.mxu0 0
      %1800 = vmatpush1.bf16.msra.mxu0 0
      %1801 = vmatprep.subr.bf16.mxu0 0
      %1802 = vmatpush1.bf16.msra.mxu0 0
      %1803 = vmatprep.subr.bf16.mxu0 0
      %1804 = vmatpush1.bf16.msra.mxu0 0
      %1805 = vmatprep.subr.bf16.mxu0 0
      %1806 = vmatpush1.bf16.msra.mxu0 0
      %1807 = vmatprep.subr.bf16.mxu0 0
      %1808 = vmatpush1.bf16.msra.mxu0 0
      %1809 = vmatprep.subr.bf16.mxu0 0
      %1810 = vmatpush1.bf16.msra.mxu0 0
      %1811 = vmatprep.subr.bf16.mxu0 0
      %1812 = vmatpush1.bf16.msra.mxu0 0
      %1813 = vmatprep.subr.bf16.mxu0 0
      %1814 = vmatpush1.bf16.msra.mxu0 0
      %1815 = vmatprep.subr.bf16.mxu0 0
      %1816 = vmatpush1.bf16.msra.mxu0 0
      %1817 = vmatprep.subr.bf16.mxu0 0
      %1818 = vmatpush1.bf16.msra.mxu0 0
      %1819 = vmatprep.mubr.bf16.mxu0 0
      %1820 = vmatmul.mubr.bf16.gmra.mrb[0].mxu0 %v1740
      %v1821 = vpop.f32.mrb[0].mxu0
      %v1822 = vadd.f32 %v1725, %v1821
      %v1823 = vpop.f32.mrb[0].mxu0
      %v1824 = vpop.f32.mrb[0].mxu0
      %v1825 = vadd.f32 %v1725, %v1824
      %v1826 = vpop.f32.mrb[0].mxu0
      %1827 = vmatprep.mubr.bf16.mxu0 0
      %1828 = vmatmul.mubr.bf16.gmra.mrb[0].mxu0 %v1743
      %v1829 = vpop.f32.mrb[0].mxu0
      %v1830 = vadd.f32 %v1725, %v1829
      %v1831 = vpop.f32.mrb[0].mxu0
      %v1832 = vpop.f32.mrb[0].mxu0
      %v1833 = vadd.f32 %v1725, %v1832
      %v1834 = vpop.f32.mrb[0].mxu0
      %1835 = vmatprep.mubr.bf16.mxu0 0
      %1836 = vmatmul.mubr.bf16.gmra.mrb[0].mxu0 %v1746
      %v1837 = vpop.f32.mrb[0].mxu0
      %v1838 = vadd.f32 %v1725, %v1837
      %v1839 = vpop.f32.mrb[0].mxu0
      %v1840 = vpop.f32.mrb[0].mxu0
      %v1841 = vadd.f32 %v1725, %v1840
      %v1842 = vpop.f32.mrb[0].mxu0
      %1843 = vmatprep.mubr.bf16.mxu0 0
      %1844 = vmatmul.mubr.bf16.gmra.mrb[0].mxu0 %v1749
      %v1845 = vpop.f32.mrb[0].mxu0
      %v1846 = vadd.f32 %v1725, %v1845
      %v1847 = vpop.f32.mrb[0].mxu0
      %v1848 = vpop.f32.mrb[0].mxu0
      %v1849 = vadd.f32 %v1725, %v1848
      %v1850 = vpop.f32.mrb[0].mxu0
      %1851 = vmatprep.mubr.bf16.mxu0 0
      %1852 = vmatmul.mubr.bf16.gmra.mrb[0].mxu0 %v1752
      %v1853 = vpop.f32.mrb[0].mxu0
      %v1854 = vadd.f32 %v1725, %v1853
      %v1855 = vpop.f32.mrb[0].mxu0
      %v1856 = vpop.f32.mrb[0].mxu0
      %v1857 = vadd.f32 %v1725, %v1856
      %v1858 = vpop.f32.mrb[0].mxu0
      %1859 = vmatprep.mubr.bf16.mxu0 0
      %1860 = vmatmul.mubr.bf16.gmra.mrb[0].mxu0 %v1755
      %v1861 = vpop.f32.mrb[0].mxu0
      %v1862 = vadd.f32 %v1725, %v1861
      %v1863 = vpop.f32.mrb[0].mxu0
      %v1864 = vpop.f32.mrb[0].mxu0
      %v1865 = vadd.f32 %v1725, %v1864
      %v1866 = vpop.f32.mrb[0].mxu0
      %1867 = vmatprep.mubr.bf16.mxu0 0
      %1868 = vmatmul.mubr.bf16.gmra.mrb[0].mxu0 %v1758
      %v1869 = vpop.f32.mrb[0].mxu0
      %v1870 = vadd.f32 %v1725, %v1869
      %v1871 = vpop.f32.mrb[0].mxu0
      %v1872 = vpop.f32.mrb[0].mxu0
      %v1873 = vadd.f32 %v1725, %v1872
      %v1874 = vpop.f32.mrb[0].mxu0
      %1875 = vmatprep.mubr.bf16.mxu0 0
      %1876 = vmatmul.mubr.bf16.gmra.mrb[0].mxu0 %v1761
      %v1877 = vpop.f32.mrb[0].mxu0
      %v1878 = vadd.f32 %v1725, %v1877
      %v1879 = vpop.f32.mrb[0].mxu0
      %v1880 = vpop.f32.mrb[0].mxu0
      %v1881 = vadd.f32 %v1725, %v1880
      %v1882 = vpop.f32.mrb[0].mxu0
      %1883 = vmatprep.mubr.bf16.mxu0 0
      %1884 = vmatmul.mubr.bf16.gmra.mrb[0].mxu0 %v1764
      %v1885 = vpop.f32.mrb[0].mxu0
      %v1886 = vadd.f32 %v1725, %v1885
      %v1887 = vpop.f32.mrb[0].mxu0
      %v1888 = vpop.f32.mrb[0].mxu0
      %v1889 = vadd.f32 %v1725, %v1888
      %v1890 = vpop.f32.mrb[0].mxu0
      %1891 = vmatprep.mubr.bf16.mxu0 0
      %1892 = vmatmul.mubr.bf16.gmra.mrb[0].mxu0 %v1767
      %v1893 = vpop.f32.mrb[0].mxu0
      %v1894 = vadd.f32 %v1725, %v1893
      %v1895 = vpop.f32.mrb[0].mxu0
      %v1896 = vpop.f32.mrb[0].mxu0
      %v1897 = vadd.f32 %v1725, %v1896
      %v1898 = vpop.f32.mrb[0].mxu0
      %1899 = vmatprep.mubr.bf16.mxu0 0
      %1900 = vmatmul.mubr.bf16.gmra.mrb[0].mxu0 %v1770
      %v1901 = vpop.f32.mrb[0].mxu0
      %v1902 = vadd.f32 %v1725, %v1901
      %v1903 = vpop.f32.mrb[0].mxu0
      %v1904 = vpop.f32.mrb[0].mxu0
      %v1905 = vadd.f32 %v1725, %v1904
      %v1906 = vpop.f32.mrb[0].mxu0
      %1907 = vmatprep.mubr.bf16.mxu0 0
      %1908 = vmatmul.mubr.bf16.gmra.mrb[0].mxu0 %v1773
      %v1909 = vpop.f32.mrb[0].mxu0
      %v1910 = vadd.f32 %v1725, %v1909
      %v1911 = vpop.f32.mrb[0].mxu0
      %v1912 = vpop.f32.mrb[0].mxu0
      %v1913 = vadd.f32 %v1725, %v1912
      %v1914 = vpop.f32.mrb[0].mxu0
      %1915 = vmatprep.mubr.bf16.mxu0 0
      %1916 = vmatmul.mubr.bf16.gmra.mrb[0].mxu0 %v1776
      %v1917 = vpop.f32.mrb[0].mxu0
      %v1918 = vadd.f32 %v1725, %v1917
      %v1919 = vpop.f32.mrb[0].mxu0
      %v1920 = vpop.f32.mrb[0].mxu0
      %v1921 = vadd.f32 %v1725, %v1920
      %v1922 = vpop.f32.mrb[0].mxu0
      %1923 = vmatprep.mubr.bf16.mxu0 0
      %1924 = vmatmul.mubr.bf16.gmra.mrb[0].mxu0 %v1779
      %v1925 = vpop.f32.mrb[0].mxu0
      %v1926 = vadd.f32 %v1725, %v1925
      %v1927 = vpop.f32.mrb[0].mxu0
      %v1928 = vpop.f32.mrb[0].mxu0
      %v1929 = vadd.f32 %v1725, %v1928
      %v1930 = vpop.f32.mrb[0].mxu0
      %1931 = vmatprep.mubr.bf16.mxu0 0
      %1932 = vmatmul.mubr.bf16.gmra.mrb[0].mxu0 %v1782
      %v1933 = vpop.f32.mrb[0].mxu0
      %v1934 = vadd.f32 %v1725, %v1933
      %v1935 = vpop.f32.mrb[0].mxu0
      %v1936 = vpop.f32.mrb[0].mxu0
      %v1937 = vadd.f32 %v1725, %v1936
      %v1938 = vpop.f32.mrb[0].mxu0
      %1939 = vmatprep.mubr.bf16.mxu0 0
      %1940 = vmatmul.mubr.bf16.gmra.mrb[0].mxu0 %v1785
      %v1941 = vpop.f32.mrb[0].mxu0
      %v1942 = vadd.f32 %v1725, %v1941
      %v1943 = vpop.f32.mrb[0].mxu0
      %v1944 = vpop.f32.mrb[0].mxu0
      %v1945 = vadd.f32 %v1725, %v1944
      %v1946 = vpop.f32.mrb[0].mxu0
      %1947 = vdwg.mxu0
      %vm1948 = vcmp.gt.f32.partialorder %v1822, 0.0
      %vm1949 = vcmp.gt.f32.partialorder %v1825, 0.0
      %vm1950 = vcmp.gt.f32.partialorder %v1830, 0.0
      %vm1951 = vcmp.gt.f32.partialorder %v1833, 0.0
      %vm1952 = vcmp.gt.f32.partialorder %v1838, 0.0
      %vm1953 = vcmp.gt.f32.partialorder %v1841, 0.0
      %vm1954 = vcmp.gt.f32.partialorder %v1846, 0.0
      %vm1955 = vcmp.gt.f32.partialorder %v1849, 0.0
      %vm1956 = vcmp.gt.f32.partialorder %v1854, 0.0
      %vm1957 = vcmp.gt.f32.partialorder %v1857, 0.0
      %vm1958 = vcmp.gt.f32.partialorder %v1862, 0.0
      %vm1959 = vcmp.gt.f32.partialorder %v1865, 0.0
      %vm1960 = vcmp.gt.f32.partialorder %v1870, 0.0
      %vm1961 = vcmp.gt.f32.partialorder %v1873, 0.0
      %vm1962 = vcmp.gt.f32.partialorder %v1878, 0.0
      %vm1963 = vcmp.gt.f32.partialorder %v1881, 0.0
      %vm1964 = vcmp.gt.f32.partialorder %v1886, 0.0
      %vm1965 = vcmp.gt.f32.partialorder %v1889, 0.0
      %vm1966 = vcmp.gt.f32.partialorder %v1894, 0.0
      %vm1967 = vcmp.gt.f32.partialorder %v1897, 0.0
      %vm1968 = vcmp.gt.f32.partialorder %v1902, 0.0
      %vm1969 = vcmp.gt.f32.partialorder %v1905, 0.0
      %vm1970 = vcmp.gt.f32.partialorder %v1910, 0.0
      %vm1971 = vcmp.gt.f32.partialorder %v1913, 0.0
      %vm1972 = vcmp.gt.f32.partialorder %v1918, 0.0
      %vm1973 = vcmp.gt.f32.partialorder %v1921, 0.0
      %vm1974 = vcmp.gt.f32.partialorder %v1926, 0.0
      %vm1975 = vcmp.gt.f32.partialorder %v1929, 0.0
      %vm1976 = vcmp.gt.f32.partialorder %v1934, 0.0
      %vm1977 = vcmp.gt.f32.partialorder %v1937, 0.0
      %vm1978 = vcmp.gt.f32.partialorder %v1942, 0.0
      %vm1979 = vcmp.gt.f32.partialorder %v1945, 0.0
      %v1980 = vmul.f32 %v1822, 0.01
      %v1981 = vmul.f32 %v1825, 0.01
      %v1982 = vmul.f32 %v1830, 0.01
      %v1983 = vmul.f32 %v1833, 0.01
      %v1984 = vmul.f32 %v1838, 0.01
      %v1985 = vmul.f32 %v1841, 0.01
      %v1986 = vmul.f32 %v1846, 0.01
      %v1987 = vmul.f32 %v1849, 0.01
      %v1988 = vmul.f32 %v1854, 0.01
      %v1989 = vmul.f32 %v1857, 0.01
      %v1990 = vmul.f32 %v1862, 0.01
      %v1991 = vmul.f32 %v1865, 0.01
      %v1992 = vmul.f32 %v1870, 0.01
      %v1993 = vmul.f32 %v1873, 0.01
      %v1994 = vmul.f32 %v1878, 0.01
      %v1995 = vmul.f32 %v1881, 0.01
      %v1996 = vmul.f32 %v1886, 0.01
      %v1997 = vmul.f32 %v1889, 0.01
      %v1998 = vmul.f32 %v1894, 0.01
      %v1999 = vmul.f32 %v1897, 0.01
      %v2000 = vmul.f32 %v1902, 0.01
      %v2001 = vmul.f32 %v1905, 0.01
      %v2002 = vmul.f32 %v1910, 0.01
      %v2003 = vmul.f32 %v1913, 0.01
      %v2004 = vmul.f32 %v1918, 0.01
      %v2005 = vmul.f32 %v1921, 0.01
      %v2006 = vmul.f32 %v1926, 0.01
      %v2007 = vmul.f32 %v1929, 0.01
      %v2008 = vmul.f32 %v1934, 0.01
      %v2009 = vmul.f32 %v1937, 0.01
      %v2010 = vmul.f32 %v1942, 0.01
      %v2011 = vmul.f32 %v1945, 0.01
      %v2012 = vsel %vm1948, %v1822, %v1980
      %v2013 = vsel %vm1949, %v1825, %v1981
      %v2014 = vsel %vm1950, %v1830, %v1982
      %v2015 = vsel %vm1951, %v1833, %v1983
      %v2016 = vsel %vm1952, %v1838, %v1984
      %v2017 = vsel %vm1953, %v1841, %v1985
      %v2018 = vsel %vm1954, %v1846, %v1986
      %v2019 = vsel %vm1955, %v1849, %v1987
      %v2020 = vsel %vm1956, %v1854, %v1988
      %v2021 = vsel %vm1957, %v1857, %v1989
      %v2022 = vsel %vm1958, %v1862, %v1990
      %v2023 = vsel %vm1959, %v1865, %v1991
      %v2024 = vsel %vm1960, %v1870, %v1992
      %v2025 = vsel %vm1961, %v1873, %v1993
      %v2026 = vsel %vm1962, %v1878, %v1994
      %v2027 = vsel %vm1963, %v1881, %v1995
      %v2028 = vsel %vm1964, %v1886, %v1996
      %v2029 = vsel %vm1965, %v1889, %v1997
      %v2030 = vsel %vm1966, %v1894, %v1998
      %v2031 = vsel %vm1967, %v1897, %v1999
      %v2032 = vsel %vm1968, %v1902, %v2000
      %v2033 = vsel %vm1969, %v1905, %v2001
      %v2034 = vsel %vm1970, %v1910, %v2002
      %v2035 = vsel %vm1971, %v1913, %v2003
      %v2036 = vsel %vm1972, %v1918, %v2004
      %v2037 = vsel %vm1973, %v1921, %v2005
      %v2038 = vsel %vm1974, %v1926, %v2006
      %v2039 = vsel %vm1975, %v1929, %v2007
      %v2040 = vsel %vm1976, %v1934, %v2008
      %v2041 = vsel %vm1977, %v1937, %v2009
      %v2042 = vsel %vm1978, %v1942, %v2010
      %v2043 = vsel %vm1979, %v1945, %v2011
      %2044 = vst.msk [vmem:[%s356] sm:$0xff] %vm1050, %v2012
      %2045 = vst.msk [vmem:[%s356 + $0x8] sm:$0xff] %vm1050, %v2013
      %2046 = vst.msk [vmem:[%s356 + $0x10] sm:$0xff] %vm1050, %v2014
      %2047 = vst.msk [vmem:[%s356 + $0x18] sm:$0xff] %vm1050, %v2015
      %2048 = vst.msk [vmem:[%s356 + $0x20] sm:$0xff] %vm1050, %v2016
      %2049 = vst.msk [vmem:[%s356 + $0x28] sm:$0xff] %vm1050, %v2017
      %2050 = vst.msk [vmem:[%s356 + $0x30] sm:$0xff] %vm1050, %v2018
      %2051 = vst.msk [vmem:[%s356 + $0x38] sm:$0xff] %vm1050, %v2019
      %2052 = vst.msk [vmem:[%s356 + $0x40] sm:$0xff] %vm1050, %v2020
      %2053 = vst.msk [vmem:[%s356 + $0x48] sm:$0xff] %vm1050, %v2021
      %2054 = vst.msk [vmem:[%s356 + $0x50] sm:$0xff] %vm1050, %v2022
      %2055 = vst.msk [vmem:[%s356 + $0x58] sm:$0xff] %vm1050, %v2023
      %2056 = vst.msk [vmem:[%s356 + $0x60] sm:$0xff] %vm1050, %v2024
      %2057 = vst.msk [vmem:[%s356 + $0x68] sm:$0xff] %vm1050, %v2025
      %2058 = vst.msk [vmem:[%s356 + $0x70] sm:$0xff] %vm1050, %v2026
      %2059 = vst.msk [vmem:[%s356 + $0x78] sm:$0xff] %vm1050, %v2027
      %2060 = vst.msk [vmem:[%s356 + $0x80] sm:$0xff] %vm1050, %v2028
      %2061 = vst.msk [vmem:[%s356 + $0x88] sm:$0xff] %vm1050, %v2029
      %2062 = vst.msk [vmem:[%s356 + $0x90] sm:$0xff] %vm1050, %v2030
      %2063 = vst.msk [vmem:[%s356 + $0x98] sm:$0xff] %vm1050, %v2031
      %2064 = vst.msk [vmem:[%s356 + $0xa0] sm:$0xff] %vm1050, %v2032
      %2065 = vst.msk [vmem:[%s356 + $0xa8] sm:$0xff] %vm1050, %v2033
      %2066 = vst.msk [vmem:[%s356 + $0xb0] sm:$0xff] %vm1050, %v2034
      %2067 = vst.msk [vmem:[%s356 + $0xb8] sm:$0xff] %vm1050, %v2035
      %2068 = vst.msk [vmem:[%s356 + $0xc0] sm:$0xff] %vm1050, %v2036
      %2069 = vst.msk [vmem:[%s356 + $0xc8] sm:$0xff] %vm1050, %v2037
      %2070 = vst.msk [vmem:[%s356 + $0xd0] sm:$0xff] %vm1050, %v2038
      %2071 = vst.msk [vmem:[%s356 + $0xd8] sm:$0xff] %vm1050, %v2039
      %2072 = vst.msk [vmem:[%s356 + $0xe0] sm:$0xff] %vm1050, %v2040
      %2073 = vst.msk [vmem:[%s356 + $0xe8] sm:$0xff] %vm1050, %v2041
      %2074 = vst.msk [vmem:[%s356 + $0xf0] sm:$0xff] %vm1050, %v2042
      %2075 = vst.msk [vmem:[%s356 + $0xf8] sm:$0xff] %vm1050, %v2043
      %s2076 = smul.u32 32, %s20
      %p2077 = scmp.lt.s32.totalorder %s2076, 63
      %s2078 = scalar_select %p2077, %s2076, 63
      %s2079 = smul.addr %s2078, 8
      %s2080 = scalar_lea.vmem %s9, %s2079
      // Predicated region
      $region57: #{dti_conv_graph3_v2.1} parent=55 // pred_check
        %p2081 = pneg %p237
      $region58: #{dti_conv_graph3_v2.1} parent=55 // pred_check_branch
        %2083 = sbr.rel (%p2081) target = $region60
      $region59: #{dti_conv_graph3_v2.1} parent=55 // pred_region
        %s2084 = smul.u32 32, %s20
      $region60: #{dti_conv_graph3_v2.1} parent=55 // pred_fallthru
        _
    $region56: #{dti_conv_graph3_v2.1} parent=5 // pred_fallthru
      _
    %p2085 = scmp.le.s32.totalorder 2, %s15
    // Predicated region
    $region61: #{dti_conv_graph3_v2.1} parent=5 // pred_check
      %p2086 = pneg %p2085
    $region62: #{dti_conv_graph3_v2.1} parent=5 // pred_check_branch
      %2088 = sbr.rel (%p2086) target = $region64
    $region63: #{dti_conv_graph3_v2.1} parent=5 // pred_region
      %s2089 = ssub.s32 %s15, 2
      // Predicated region
      $region65: #{dti_conv_graph3_v2.1} parent=63 // pred_check
        %p2090 = pneg %p243
      $region66: #{dti_conv_graph3_v2.1} parent=63 // pred_check_branch
        %2092 = sbr.rel (%p2090) target = $region68
      $region67: #{dti_conv_graph3_v2.1} parent=63 // pred_region
        %s2093 = smul.u32 32, %s21
        %p2094 = scmp.lt.s32.totalorder %s2093, 63
        %s2095 = scalar_select %p2094, %s2093, 63
        %s2096 = smul.addr %s2095, 8
        %s2097 = scalar_lea.vmem %s9, %s2096
      $region68: #{dti_conv_graph3_v2.1} parent=63 // pred_fallthru
        _
    $region64: #{dti_conv_graph3_v2.1} parent=5 // pred_fallthru
      _
  $region6: #{dti_conv_graph3_v2.1} parent=0 // loop_footer
    %s19 = sadd.s32 1, %s15
  $region7: #{dti_conv_graph3_v2.1} parent=0 // loop_footer_branch
    %14 = sbr.rel target = $region3
  $region8: #{dti_conv_graph3_v2.1} parent=0 // loop_exit
    _

</llo_original>
